<compile_context>
chip_gen: v5e
topology: v5e:2x2
jax: 0.10.0
libtpu: 0.0.40
codegen_flags: <defaults>
</compile_context>

<pallas_src>
import numpy as np
import jax
import jax.numpy as jnp
from jax.experimental import pallas as pl
from jax.experimental.pallas import tpu as pltpu

NF = 32                  # number of features (nf)
DLAT = 32                # dlatent size
H = W = 4
S = H * W                # 16 spatial positions
F = S * NF               # 512 = flattened (spatial, channel) lane axis
EPS_IN = 1e-5            # nn.InstanceNorm2d default eps
NEG_SLOPE = 0.2          # LeakyReLU(0.2)


# ----------------------------- Pallas kernel ---------------------------------
def input_block_kernel(dlat_ref, noise_ref, stylew_ref, styleb_ref,
                       nzw_ref, nzb_ref, red_ref, bcast_ref, bigw_ref, o_ref):
    f32 = jnp.float32

    # Compact per-batch styles for both layers (+1 folded into the scale bias):
    #   [scale1+1 | shift1 | scale2+1 | shift2]   -> (BB, 4*NF)
    style = jnp.dot(dlat_ref[...], stylew_ref[...],
                    preferred_element_type=f32) + styleb_ref[...]

    noise = noise_ref[...]          # (BB, 2*S) = [noise1_flat | noise2_flat]
    red = red_ref[...]              # (F, NF)  per-channel spatial-mean reduce
    bc = bcast_ref[...]             # (NF, F)  channel -> flat broadcast

    def epilogue(x, sc1p, sh):
        # LeakyReLU(0.2)
        x = jnp.maximum(x, NEG_SLOPE * x)
        # InstanceNorm2d via compact (BB, NF) stats (centered-variance form)
        mean_c = jnp.dot(x, red, preferred_element_type=f32)          # (BB, NF)
        xc = x - jnp.dot(mean_c, bc, preferred_element_type=f32)
        var_c = jnp.dot(xc * xc, red, preferred_element_type=f32)     # (BB, NF)
        # StyleMod fused with inv-std: xc * bcast(rsqrt(var)*(scale+1)) + bcast(shift)
        m_c = jax.lax.rsqrt(var_c + EPS_IN) * sc1p
        return (xc * jnp.dot(m_c, bc, preferred_element_type=f32)
                + jnp.dot(sh, bc, preferred_element_type=f32))

    # Layer 1: const + bias (folded into nzb[:, :F]) + weighted noise1.
    x = jnp.dot(noise, nzw_ref[:, :F], preferred_element_type=f32) + nzb_ref[:, :F]
    x = epilogue(x, style[:, 0 * NF:1 * NF], style[:, 1 * NF:2 * NF])

    # 3x3 SAME conv as one dense (F, F) bf16 matmul (f32 accumulation).
    x = jnp.dot(x.astype(jnp.bfloat16), bigw_ref[...], preferred_element_type=f32)
    # Layer 2: conv bias (folded into nzb[:, F:]) + weighted noise2.
    x = x + jnp.dot(noise, nzw_ref[:, F:], preferred_element_type=f32) + nzb_ref[:, F:]
    x = epilogue(x, style[:, 2 * NF:3 * NF], style[:, 3 * NF:4 * NF])

    o_ref[...] = x


# --------------------------- parameter packing --------------------------------
def _build_conv_operator(conv_W):
    """Collapse the 3x3 SAME conv into a dense (F, F) operator.

    BigW[(s_in, c_in), (s_out, c_out)] = W[c_out, c_in, kh, kw] for the unique
    tap (kh, kw) mapping s_out -> s_in (cross-correlation, padding=1), else 0.
    """
    w = np.asarray(conv_W, np.float32)                       # (cout, cin, 3, 3)
    big = np.zeros((F, F), np.float32)
    for kh in range(3):
        for kw in range(3):
            dh, dw = kh - 1, kw - 1
            wt = w[:, :, kh, kw].T                           # (cin, cout)
            for ho in range(H):
                for wo in range(W):
                    hi, wi = ho + dh, wo + dw
                    if 0 <= hi < H and 0 <= wi < W:
                        si, so = hi * W + wi, ho * W + wo
                        big[si * NF:(si + 1) * NF, so * NF:(so + 1) * NF] = wt
    return big


def pack_params(raw):
    """Repack PyTorch-convention parameters into the fused kernel operators."""
    nf, D = NF, DLAT
    f32 = jnp.float32

    # const + bias, flattened to (1, F) with index s*nf + c
    const = raw["const_nchw"][0]                             # (nf, H, W)
    base = jnp.transpose(const, (1, 2, 0)).reshape(S, nf) + raw["bias"][None, :]
    base_flat = base.reshape(1, F).astype(f32)
    convb_flat = jnp.tile(raw["conv_b"], S).reshape(1, F).astype(f32)

    # Compact style operator: style_i = dlat_i @ s_i_W.T + s_i_b; block-diagonal
    # over the two layers, columns ordered [sc1 | sh1 | sc2 | sh2].
    z = jnp.zeros((D, 2 * nf), f32)
    s1 = raw["s1_W"].T.astype(f32)                           # (D, 2nf)
    s2 = raw["s2_W"].T.astype(f32)
    stylew = jnp.concatenate([
        jnp.concatenate([s1, z], axis=1),
        jnp.concatenate([z, s2], axis=1)], axis=0)           # (2D, 4nf)
    styleb = jnp.concatenate([
        raw["s1_b"][:nf] + 1.0, raw["s1_b"][nf:],            # "+1" of StyleMod folded
        raw["s2_b"][:nf] + 1.0, raw["s2_b"][nf:]]).reshape(1, 4 * nf).astype(f32)

    # Noise spatial-broadcast operators (NoiseLayer weights folded in);
    # base / conv-bias folded into the corresponding bias columns.
    eye_s = jnp.eye(S, dtype=f32)
    n1 = jnp.kron(eye_s, raw["nw1"].reshape(1, nf))          # (S, F)
    n2 = jnp.kron(eye_s, raw["nw2"].reshape(1, nf))
    zs = jnp.zeros((S, F), f32)
    nzw = jnp.concatenate([
        jnp.concatenate([n1, zs], axis=1),
        jnp.concatenate([zs, n2], axis=1)], axis=0).astype(f32)   # (2S, 2F)
    nzb = jnp.concatenate([base_flat, convb_flat], axis=1)        # (1, 2F)

    # Factored instance-norm operators (rank-32, exact):
    #   red:  (F, NF) spatial-mean reduce,  bcast: (NF, F) channel -> flat.
    red = (jnp.kron(jnp.ones((S, 1), f32), jnp.eye(nf, dtype=f32)) / S).astype(f32)
    bcast = jnp.kron(jnp.ones((1, S), f32), jnp.eye(nf, dtype=f32)).astype(f32)

    bigw = jnp.asarray(_build_conv_operator(raw["conv_W"])).astype(jnp.bfloat16)

    return dict(stylew=stylew, styleb=styleb, nzw=nzw, nzb=nzb,
                red=red, bcast=bcast, bigw=bigw)


# ------------------------------ forward wrapper --------------------------------
def input_block_forward(dlatents, kparams, noise1_nchw, noise2_nchw, *, block_b=None):
    """dlatents: (B, 2, DLAT) f32. Returns NCHW (B, NF, 4, 4)."""
    B = dlatents.shape[0]

    dlat_in = dlatents.reshape(B, 2 * DLAT).astype(jnp.float32)          # (B, 64)
    noise_in = jnp.concatenate(
        [noise1_nchw.reshape(B, S), noise2_nchw.reshape(B, S)],
        axis=1).astype(jnp.float32)                                      # (B, 32)

    if block_b is None:
        if B <= 8:
            block_b = 8                 # single step; overhead negligible at this size
        elif B <= 512:
            # at least two 8-aligned steps so both v7x TensorCores get work
            block_b = min(256, (((B + 1) // 2 + 7) // 8) * 8)
        else:
            block_b = 256               # multiple of MXU M (128 on v5e, 256 on v6e/v7x)
    bp = ((B + block_b - 1) // block_b) * block_b
    if bp != B:
        pad = ((0, bp - B), (0, 0))
        dlat_in = jnp.pad(dlat_in, pad)
        noise_in = jnp.pad(noise_in, pad)
    nsteps = bp // block_b

    def param_spec(shape):
        return pl.BlockSpec(shape, lambda i: (0, 0))

    in_specs = [
        pl.BlockSpec((block_b, 2 * DLAT), lambda i: (i, 0)),   # dlatents (both layers)
        pl.BlockSpec((block_b, 2 * S), lambda i: (i, 0)),      # noise (both layers)
        param_spec((2 * DLAT, 4 * NF)),                        # compact style weights
        param_spec((1, 4 * NF)),                               # style biases (+1 folded)
        param_spec((2 * S, 2 * F)),                            # noise broadcast operators
        param_spec((1, 2 * F)),                                # base / conv-bias folded
        param_spec((F, NF)),                                   # spatial-mean reduce
        param_spec((NF, F)),                                   # channel->flat broadcast
        param_spec((F, F)),                                    # bf16 conv operator
    ]
    out_specs = pl.BlockSpec((block_b, F), lambda i: (i, 0))

    flops = bp * 2 * (2 * DLAT * 4 * NF                        # style
                      + 2 * (2 * S) * F                        # noise broadcasts
                      + 2 * (2 * F * NF + 3 * NF * F)          # instance-norm/style ops
                      + F * F)                                 # conv
    bytes_accessed = (4 * (bp * (2 * DLAT + 2 * S + F)
                           + 2 * DLAT * 4 * NF + 4 * NF
                           + 2 * S * 2 * F + 2 * F
                           + 2 * F * NF)
                      + 2 * F * F)
    cost = pl.CostEstimate(flops=flops, transcendentals=bp * 2 * NF,
                           bytes_accessed=bytes_accessed)

    out_flat = pl.pallas_call(
        input_block_kernel,
        out_shape=jax.ShapeDtypeStruct((bp, F), jnp.float32),
        grid=(nsteps,),
        in_specs=in_specs,
        out_specs=out_specs,
        compiler_params=pltpu.CompilerParams(dimension_semantics=("parallel",)),
        cost_estimate=cost,
    )(dlat_in, noise_in, kparams["stylew"], kparams["styleb"],
      kparams["nzw"], kparams["nzb"], kparams["red"], kparams["bcast"],
      kparams["bigw"])

    # back to PyTorch NCHW
    out = out_flat[:B].reshape(B, H, W, NF)
    return jnp.transpose(out, (0, 3, 1, 2))


# ---------------- pure-JAX reference (mirrors the PyTorch module) --------------
def reference_forward(dlatents, raw, noise1, noise2):
    B = dlatents.shape[0]
    hp = jax.lax.Precision.HIGHEST

    x = jnp.broadcast_to(raw["const_nchw"], (B, NF, H, W)) + raw["bias"].reshape(1, -1, 1, 1)

    def epilogue(x, nweight, noise, dlat, sW, sb):
        x = x + nweight.reshape(1, -1, 1, 1) * noise
        x = jnp.maximum(x, NEG_SLOPE * x)
        mean = x.mean(axis=(2, 3), keepdims=True)
        var = ((x - mean) ** 2).mean(axis=(2, 3), keepdims=True)
        x = (x - mean) * jax.lax.rsqrt(var + EPS_IN)
        style = jnp.dot(dlat, sW.T, precision=hp) + sb        # (B, 2*NF)
        style = style.reshape(B, 2, NF, 1, 1)
        return x * (style[:, 0] + 1.0) + style[:, 1]

    x = epilogue(x, raw["nw1"], noise1, dlatents[:, 0], raw["s1_W"], raw["s1_b"])
    x = jax.lax.conv_general_dilated(
        x, raw["conv_W"], (1, 1), "SAME",
        dimension_numbers=("NCHW", "OIHW", "NCHW"), precision=hp)
    x = x + raw["conv_b"].reshape(1, -1, 1, 1)
    x = epilogue(x, raw["nw2"], noise2, dlatents[:, 1], raw["s2_W"], raw["s2_b"])
    return x


if __name__ == "__main__":
    B = 2
    key = jax.random.PRNGKey(0)
    k = jax.random.split(key, 16)
    gain = float(np.sqrt(2.0))

    dlatents = jax.random.normal(k[0], (B, 2, DLAT), jnp.float32)
    # Noise drawn once, deterministically, and passed in (the "given noise" path).
    noise1 = jax.random.normal(k[1], (B, 1, H, W), jnp.float32)
    noise2 = jax.random.normal(k[2], (B, 1, H, W), jnp.float32)

    # Parameters (PyTorch-convention shapes). Equalized-lr (wscale) runtime
    # multipliers are folded into the weights here (pure scaling glue).
    const_nchw = jax.random.normal(k[3], (1, NF, H, W), jnp.float32)     # __init__: ones
    bias = jax.random.normal(k[4], (NF,), jnp.float32)                   # __init__: ones
    nw1 = 0.1 * jax.random.normal(k[5], (NF,), jnp.float32)              # NoiseLayer weight
    nw2 = 0.1 * jax.random.normal(k[6], (NF,), jnp.float32)
    he_style = 1.0 / np.sqrt(DLAT)                                       # StyleMod linear, gain=1
    s1_W = jax.random.normal(k[7], (2 * NF, DLAT), jnp.float32) * he_style
    s1_b = 0.1 * jax.random.normal(k[8], (2 * NF,), jnp.float32)
    s2_W = jax.random.normal(k[9], (2 * NF, DLAT), jnp.float32) * he_style
    s2_b = 0.1 * jax.random.normal(k[10], (2 * NF,), jnp.float32)
    he_conv = gain / np.sqrt(NF * 3 * 3)                                 # CustomConv2d wscale
    conv_W = jax.random.normal(k[11], (NF, NF, 3, 3), jnp.float32) * he_conv
    conv_b = 0.1 * jax.random.normal(k[12], (NF,), jnp.float32)

    raw = dict(const_nchw=const_nchw, bias=bias, nw1=nw1, nw2=nw2,
               s1_W=s1_W, s1_b=s1_b, s2_W=s2_W, s2_b=s2_b,
               conv_W=conv_W, conv_b=conv_b)

    kparams = pack_params(raw)

    out = jax.block_until_ready(input_block_forward(dlatents, kparams, noise1, noise2))
    ref = jax.block_until_ready(reference_forward(dlatents, raw, noise1, noise2))

    assert out.shape == (B, NF, H, W), out.shape
    # Tolerance reflects bf16 conv operands (f32 accumulation) followed by an
    # instance-norm; the f32 reference uses HIGHEST precision. Real layout or
    # semantics bugs produce O(1) errors, far above this bound.
    err = float(np.max(np.abs(np.asarray(out) - np.asarray(ref))))
    assert np.allclose(np.asarray(out), np.asarray(ref), atol=8e-2, rtol=8e-2), err
    print("KERNEL_OK")
</pallas_src>

<mosaic_0001>
module attributes {stable_mosaic.version = 11 : i64} {
  func.func @input_block_kernel(%arg0: i32, %arg1: memref<8x64xf32, #tpu.memory_space<vmem>>, %arg2: memref<8x32xf32, #tpu.memory_space<vmem>>, %arg3: memref<64x128xf32, #tpu.memory_space<vmem>>, %arg4: memref<1x128xf32, #tpu.memory_space<vmem>>, %arg5: memref<32x1024xf32, #tpu.memory_space<vmem>>, %arg6: memref<1x1024xf32, #tpu.memory_space<vmem>>, %arg7: memref<512x32xf32, #tpu.memory_space<vmem>>, %arg8: memref<32x512xf32, #tpu.memory_space<vmem>>, %arg9: memref<512x512xbf16, #tpu.memory_space<vmem>>, %arg10: memref<8x512xf32, #tpu.memory_space<vmem>>) attributes {dimension_semantics = [#tpu.dimension_semantics<parallel>], iteration_bounds = array<i64: 1>, scalar_prefetch = 0 : i64, scratch_operands = 0 : i64, tpu.core_type = #tpu.core_type<tc>, window_params = [{transform_indices = @transform_0, window_bounds = array<i64: 8, 64>}, {transform_indices = @transform_1, window_bounds = array<i64: 8, 32>}, {pipeline_mode = #tpu.pipeline_mode<synchronous>, transform_indices = @transform_2, window_bounds = array<i64: 64, 128>}, {pipeline_mode = #tpu.pipeline_mode<synchronous>, transform_indices = @transform_3, window_bounds = array<i64: 1, 128>}, {pipeline_mode = #tpu.pipeline_mode<synchronous>, transform_indices = @transform_4, window_bounds = array<i64: 32, 1024>}, {pipeline_mode = #tpu.pipeline_mode<synchronous>, transform_indices = @transform_5, window_bounds = array<i64: 1, 1024>}, {pipeline_mode = #tpu.pipeline_mode<synchronous>, transform_indices = @transform_6, window_bounds = array<i64: 512, 32>}, {pipeline_mode = #tpu.pipeline_mode<synchronous>, transform_indices = @transform_7, window_bounds = array<i64: 32, 512>}, {pipeline_mode = #tpu.pipeline_mode<synchronous>, transform_indices = @transform_8, window_bounds = array<i64: 512, 512>}, {transform_indices = @transform_9, window_bounds = array<i64: 8, 512>}]} {
    %c0 = arith.constant 0 : index
    %c0_0 = arith.constant 0 : index
    %0 = vector.load %arg1[%c0, %c0_0] : memref<8x64xf32, #tpu.memory_space<vmem>>, vector<8x64xf32>
    %c0_1 = arith.constant 0 : index
    %c0_2 = arith.constant 0 : index
    %1 = vector.load %arg3[%c0_1, %c0_2] : memref<64x128xf32, #tpu.memory_space<vmem>>, vector<64x128xf32>
    %cst = arith.constant dense<0.000000e+00> : vector<8x128xf32>
    %2 = tpu.matmul %0, %1, %cst {dimension_numbers = #tpu.dot_dimension_numbers<[1], [0], [0], [1], [0, 0, 1, 1], [], []>} : vector<8x64xf32>, vector<64x128xf32>, vector<8x128xf32> -> vector<8x128xf32>
    %c0_3 = arith.constant 0 : index
    %c0_4 = arith.constant 0 : index
    %3 = vector.load %arg4[%c0_3, %c0_4] : memref<1x128xf32, #tpu.memory_space<vmem>>, vector<1x128xf32>
    %4 = vector.broadcast %3 : vector<1x128xf32> to vector<8x128xf32>
    %5 = arith.addf %2, %4 : vector<8x128xf32>
    %c0_5 = arith.constant 0 : index
    %c0_6 = arith.constant 0 : index
    %6 = vector.load %arg2[%c0_5, %c0_6] : memref<8x32xf32, #tpu.memory_space<vmem>>, vector<8x32xf32>
    %c0_7 = arith.constant 0 : index
    %c0_8 = arith.constant 0 : index
    %7 = vector.load %arg7[%c0_7, %c0_8] : memref<512x32xf32, #tpu.memory_space<vmem>>, vector<512x32xf32>
    %c0_9 = arith.constant 0 : index
    %c0_10 = arith.constant 0 : index
    %8 = vector.load %arg8[%c0_9, %c0_10] : memref<32x512xf32, #tpu.memory_space<vmem>>, vector<32x512xf32>
    %c0_11 = arith.constant 0 : index
    %c0_12 = arith.constant 0 : index
    %9 = vector.load %arg5[%c0_11, %c0_12] : memref<32x1024xf32, #tpu.memory_space<vmem>>, vector<32x512xf32>
    %cst_13 = arith.constant dense<0.000000e+00> : vector<8x512xf32>
    %10 = tpu.matmul %6, %9, %cst_13 {dimension_numbers = #tpu.dot_dimension_numbers<[1], [0], [0], [1], [0, 0, 1, 1], [], []>} : vector<8x32xf32>, vector<32x512xf32>, vector<8x512xf32> -> vector<8x512xf32>
    %c0_14 = arith.constant 0 : index
    %c0_15 = arith.constant 0 : index
    %11 = vector.load %arg6[%c0_14, %c0_15] : memref<1x1024xf32, #tpu.memory_space<vmem>>, vector<1x512xf32>
    %12 = vector.broadcast %11 : vector<1x512xf32> to vector<8x512xf32>
    %13 = arith.addf %10, %12 : vector<8x512xf32>
    %14 = vector.extract_strided_slice %5 {offsets = [0, 0], sizes = [8, 32], strides = [1, 1]} : vector<8x128xf32> to vector<8x32xf32>
    %15 = vector.extract_strided_slice %5 {offsets = [0, 32], sizes = [8, 32], strides = [1, 1]} : vector<8x128xf32> to vector<8x32xf32>
    %cst_16 = arith.constant 2.000000e-01 : f32
    %16 = vector.broadcast %cst_16 : f32 to vector<8x512xf32>
    %17 = arith.mulf %16, %13 : vector<8x512xf32>
    %18 = arith.maximumf %13, %17 : vector<8x512xf32>
    %cst_17 = arith.constant dense<0.000000e+00> : vector<8x32xf32>
    %19 = tpu.matmul %18, %7, %cst_17 {dimension_numbers = #tpu.dot_dimension_numbers<[1], [0], [0], [1], [0, 0, 1, 1], [], []>} : vector<8x512xf32>, vector<512x32xf32>, vector<8x32xf32> -> vector<8x32xf32>
    %cst_18 = arith.constant dense<0.000000e+00> : vector<8x512xf32>
    %20 = tpu.matmul %19, %8, %cst_18 {dimension_numbers = #tpu.dot_dimension_numbers<[1], [0], [0], [1], [0, 0, 1, 1], [], []>} : vector<8x32xf32>, vector<32x512xf32>, vector<8x512xf32> -> vector<8x512xf32>
    %21 = arith.subf %18, %20 : vector<8x512xf32>
    %22 = arith.mulf %21, %21 : vector<8x512xf32>
    %cst_19 = arith.constant dense<0.000000e+00> : vector<8x32xf32>
    %23 = tpu.matmul %22, %7, %cst_19 {dimension_numbers = #tpu.dot_dimension_numbers<[1], [0], [0], [1], [0, 0, 1, 1], [], []>} : vector<8x512xf32>, vector<512x32xf32>, vector<8x32xf32> -> vector<8x32xf32>
    %cst_20 = arith.constant 9.99999974E-6 : f32
    %24 = vector.broadcast %cst_20 : f32 to vector<8x32xf32>
    %25 = arith.addf %23, %24 : vector<8x32xf32>
    %26 = math.rsqrt %25 : vector<8x32xf32>
    %27 = arith.mulf %26, %14 : vector<8x32xf32>
    %cst_21 = arith.constant dense<0.000000e+00> : vector<8x512xf32>
    %28 = tpu.matmul %27, %8, %cst_21 {dimension_numbers = #tpu.dot_dimension_numbers<[1], [0], [0], [1], [0, 0, 1, 1], [], []>} : vector<8x32xf32>, vector<32x512xf32>, vector<8x512xf32> -> vector<8x512xf32>
    %29 = arith.mulf %21, %28 : vector<8x512xf32>
    %cst_22 = arith.constant dense<0.000000e+00> : vector<8x512xf32>
    %30 = tpu.matmul %15, %8, %cst_22 {dimension_numbers = #tpu.dot_dimension_numbers<[1], [0], [0], [1], [0, 0, 1, 1], [], []>} : vector<8x32xf32>, vector<32x512xf32>, vector<8x512xf32> -> vector<8x512xf32>
    %31 = arith.addf %29, %30 : vector<8x512xf32>
    %32 = arith.truncf %31 : vector<8x512xf32> to vector<8x512xbf16>
    %c0_23 = arith.constant 0 : index
    %c0_24 = arith.constant 0 : index
    %33 = vector.load %arg9[%c0_23, %c0_24] : memref<512x512xbf16, #tpu.memory_space<vmem>>, vector<512x512xbf16>
    %cst_25 = arith.constant dense<0.000000e+00> : vector<8x512xf32>
    %34 = tpu.matmul %32, %33, %cst_25 {dimension_numbers = #tpu.dot_dimension_numbers<[1], [0], [0], [1], [0, 0, 1, 1], [], []>} : vector<8x512xbf16>, vector<512x512xbf16>, vector<8x512xf32> -> vector<8x512xf32>
    %c0_26 = arith.constant 0 : index
    %c512 = arith.constant 512 : index
    %35 = vector.load %arg5[%c0_26, %c512] : memref<32x1024xf32, #tpu.memory_space<vmem>>, vector<32x512xf32>
    %cst_27 = arith.constant dense<0.000000e+00> : vector<8x512xf32>
    %36 = tpu.matmul %6, %35, %cst_27 {dimension_numbers = #tpu.dot_dimension_numbers<[1], [0], [0], [1], [0, 0, 1, 1], [], []>} : vector<8x32xf32>, vector<32x512xf32>, vector<8x512xf32> -> vector<8x512xf32>
    %37 = arith.addf %34, %36 : vector<8x512xf32>
    %c0_28 = arith.constant 0 : index
    %c512_29 = arith.constant 512 : index
    %38 = vector.load %arg6[%c0_28, %c512_29] : memref<1x1024xf32, #tpu.memory_space<vmem>>, vector<1x512xf32>
    %39 = vector.broadcast %38 : vector<1x512xf32> to vector<8x512xf32>
    %40 = arith.addf %37, %39 : vector<8x512xf32>
    %41 = vector.extract_strided_slice %5 {offsets = [0, 64], sizes = [8, 32], strides = [1, 1]} : vector<8x128xf32> to vector<8x32xf32>
    %42 = vector.extract_strided_slice %5 {offsets = [0, 96], sizes = [8, 32], strides = [1, 1]} : vector<8x128xf32> to vector<8x32xf32>
    %cst_30 = arith.constant 2.000000e-01 : f32
    %43 = vector.broadcast %cst_30 : f32 to vector<8x512xf32>
    %44 = arith.mulf %43, %40 : vector<8x512xf32>
    %45 = arith.maximumf %40, %44 : vector<8x512xf32>
    %cst_31 = arith.constant dense<0.000000e+00> : vector<8x32xf32>
    %46 = tpu.matmul %45, %7, %cst_31 {dimension_numbers = #tpu.dot_dimension_numbers<[1], [0], [0], [1], [0, 0, 1, 1], [], []>} : vector<8x512xf32>, vector<512x32xf32>, vector<8x32xf32> -> vector<8x32xf32>
    %cst_32 = arith.constant dense<0.000000e+00> : vector<8x512xf32>
    %47 = tpu.matmul %46, %8, %cst_32 {dimension_numbers = #tpu.dot_dimension_numbers<[1], [0], [0], [1], [0, 0, 1, 1], [], []>} : vector<8x32xf32>, vector<32x512xf32>, vector<8x512xf32> -> vector<8x512xf32>
    %48 = arith.subf %45, %47 : vector<8x512xf32>
    %49 = arith.mulf %48, %48 : vector<8x512xf32>
    %cst_33 = arith.constant dense<0.000000e+00> : vector<8x32xf32>
    %50 = tpu.matmul %49, %7, %cst_33 {dimension_numbers = #tpu.dot_dimension_numbers<[1], [0], [0], [1], [0, 0, 1, 1], [], []>} : vector<8x512xf32>, vector<512x32xf32>, vector<8x32xf32> -> vector<8x32xf32>
    %cst_34 = arith.constant 9.99999974E-6 : f32
    %51 = vector.broadcast %cst_34 : f32 to vector<8x32xf32>
    %52 = arith.addf %50, %51 : vector<8x32xf32>
    %53 = math.rsqrt %52 : vector<8x32xf32>
    %54 = arith.mulf %53, %41 : vector<8x32xf32>
    %cst_35 = arith.constant dense<0.000000e+00> : vector<8x512xf32>
    %55 = tpu.matmul %54, %8, %cst_35 {dimension_numbers = #tpu.dot_dimension_numbers<[1], [0], [0], [1], [0, 0, 1, 1], [], []>} : vector<8x32xf32>, vector<32x512xf32>, vector<8x512xf32> -> vector<8x512xf32>
    %56 = arith.mulf %48, %55 : vector<8x512xf32>
    %cst_36 = arith.constant dense<0.000000e+00> : vector<8x512xf32>
    %57 = tpu.matmul %42, %8, %cst_36 {dimension_numbers = #tpu.dot_dimension_numbers<[1], [0], [0], [1], [0, 0, 1, 1], [], []>} : vector<8x32xf32>, vector<32x512xf32>, vector<8x512xf32> -> vector<8x512xf32>
    %58 = arith.addf %56, %57 : vector<8x512xf32>
    %c0_37 = arith.constant 0 : index
    %c0_38 = arith.constant 0 : index
    %59 = vector.load %arg10[%c0_37, %c0_38] : memref<8x512xf32, #tpu.memory_space<vmem>>, vector<8x512xf32>
    tpu.vector_store %arg10[%c0_37, %c0_38], %58 {strides = array<i32>} : memref<8x512xf32, #tpu.memory_space<vmem>>, vector<8x512xf32>,
    return
  }
  func.func @transform_0(%arg0: i32) -> (i32, i32) {
    %c0_i32 = arith.constant 0 : i32
    %c0_i32_0 = arith.constant 0 : i32
    return %arg0, %c0_i32 : i32, i32
  }
  func.func @transform_1(%arg0: i32) -> (i32, i32) {
    %c0_i32 = arith.constant 0 : i32
    %c0_i32_0 = arith.constant 0 : i32
    return %arg0, %c0_i32 : i32, i32
  }
  func.func @transform_2(%arg0: i32) -> (i32, i32) {
    %c0_i32 = arith.constant 0 : i32
    %c0_i32_0 = arith.constant 0 : i32
    %c0_i32_1 = arith.constant 0 : i32
    return %c0_i32, %c0_i32_0 : i32, i32
  }
  func.func @transform_3(%arg0: i32) -> (i32, i32) {
    %c0_i32 = arith.constant 0 : i32
    %c0_i32_0 = arith.constant 0 : i32
    %c0_i32_1 = arith.constant 0 : i32
    return %c0_i32, %c0_i32_0 : i32, i32
  }
  func.func @transform_4(%arg0: i32) -> (i32, i32) {
    %c0_i32 = arith.constant 0 : i32
    %c0_i32_0 = arith.constant 0 : i32
    %c0_i32_1 = arith.constant 0 : i32
    return %c0_i32, %c0_i32_0 : i32, i32
  }
  func.func @transform_5(%arg0: i32) -> (i32, i32) {
    %c0_i32 = arith.constant 0 : i32
    %c0_i32_0 = arith.constant 0 : i32
    %c0_i32_1 = arith.constant 0 : i32
    return %c0_i32, %c0_i32_0 : i32, i32
  }
  func.func @transform_6(%arg0: i32) -> (i32, i32) {
    %c0_i32 = arith.constant 0 : i32
    %c0_i32_0 = arith.constant 0 : i32
    %c0_i32_1 = arith.constant 0 : i32
    return %c0_i32, %c0_i32_0 : i32, i32
  }
  func.func @transform_7(%arg0: i32) -> (i32, i32) {
    %c0_i32 = arith.constant 0 : i32
    %c0_i32_0 = arith.constant 0 : i32
    %c0_i32_1 = arith.constant 0 : i32
    return %c0_i32, %c0_i32_0 : i32, i32
  }
  func.func @transform_8(%arg0: i32) -> (i32, i32) {
    %c0_i32 = arith.constant 0 : i32
    %c0_i32_0 = arith.constant 0 : i32
    %c0_i32_1 = arith.constant 0 : i32
    return %c0_i32, %c0_i32_0 : i32, i32
  }
  func.func @transform_9(%arg0: i32) -> (i32, i32) {
    %c0_i32 = arith.constant 0 : i32
    %c0_i32_0 = arith.constant 0 : i32
    return %arg0, %c0_i32 : i32, i32
  }
}

</mosaic_0001>

<llo_original>
// kernel: tpu_custom_call.1
$region0: #{tpu_custom_call.1}
  #allocation0 [shape = 'u32[]', space=smem, size = 0x4, offset = 0x4, fixed_abs, tag = 'smem constant byte address 0x4 - core index']
  #allocation1 [shape = 'u32[72,128]{1,0:T(1,128)}', space=vmem, size = 0x9000, scoped, tag = 'internal scratch']
  %s0 = inlined_call_operand.vmem [shape: f32[8,64], index: 0, kind: input, shape index: {}]
  %s1 = inlined_call_operand.vmem [shape: f32[8,32], index: 1, kind: input, shape index: {}]
  %s2 = inlined_call_operand.vmem [shape: f32[64,128], index: 2, kind: input, shape index: {}]
  %s3 = inlined_call_operand.vmem [shape: f32[1,128], index: 3, kind: input, shape index: {}]
  %s4 = inlined_call_operand.vmem [shape: f32[32,1024], index: 4, kind: input, shape index: {}]
  %s5 = inlined_call_operand.vmem [shape: f32[1,1024], index: 5, kind: input, shape index: {}]
  %s6 = inlined_call_operand.vmem [shape: f32[512,32], index: 6, kind: input, shape index: {}]
  %s7 = inlined_call_operand.vmem [shape: f32[32,512], index: 7, kind: input, shape index: {}]
  %s8 = inlined_call_operand.hbm [shape: bf16[512,512], index: 8, kind: input, shape index: {}]
  %s9 = inlined_call_operand.hbm [shape: f32[8,512], index: 9, kind: output, shape index: {}]
  %s10 = sld [smem:[#allocation0]]
  $region50: #{tpu_custom_call.1} parent=0
    _
  %s12 = ssub.s32 1, %s10
  %s13 = scalar_select 0, %s12, %s10
  $region1: #{tpu_custom_call.1} parent=0
    #allocation2 [shape = 'u8[524288]{0}', space=vmem, size = 0x80000, scoped, tag = 'input window, operand 8, single buffered']
    #allocation3 [shape = 's32[1]{0}', space=sflag, size = 0x4, scoped, tag = 'scoped memory for tpu_custom_call.1']
    #allocation4 [shape = 's32[1]{0}', space=sflag, size = 0x4, scoped, tag = 'scoped memory for tpu_custom_call.1']
    #allocation5 [shape = 'u8[16384]{0}', space=vmem, size = 0x4000, scoped, tag = 'output window, operand 0, single buffered']
    %14 = vsyncpa [#allocation3], 0
    %15 = vsyncpa [#allocation4], 0
    // Predicated region
    $region2: #{tpu_custom_call.1} parent=1 // pred_check
      _
    $region3: #{tpu_custom_call.1} parent=1 // pred_check_branch
      %17 = sbr.rel (0) target = $region5
    $region4: #{tpu_custom_call.1} parent=1 // pred_region
      _
    $region5: #{tpu_custom_call.1} parent=1 // pred_fallthru
      _
    // Predicated region
    $region6: #{tpu_custom_call.1} parent=1 // pred_check
      _
    $region7: #{tpu_custom_call.1} parent=1 // pred_check_branch
      %19 = sbr.rel (0) target = $region9
    $region8: #{tpu_custom_call.1} parent=1 // pred_region
      _
    $region9: #{tpu_custom_call.1} parent=1 // pred_fallthru
      _
    // Predicated region
    $region10: #{tpu_custom_call.1} parent=1 // pred_check
      _
    $region11: #{tpu_custom_call.1} parent=1 // pred_check_branch
      %21 = sbr.rel (0) target = $region13
    $region12: #{tpu_custom_call.1} parent=1 // pred_region
      _
    $region13: #{tpu_custom_call.1} parent=1 // pred_fallthru
      _
    // Predicated region
    $region14: #{tpu_custom_call.1} parent=1 // pred_check
      _
    $region15: #{tpu_custom_call.1} parent=1 // pred_check_branch
      %23 = sbr.rel (0) target = $region17
    $region16: #{tpu_custom_call.1} parent=1 // pred_region
      _
    $region17: #{tpu_custom_call.1} parent=1 // pred_fallthru
      _
    // Predicated region
    $region18: #{tpu_custom_call.1} parent=1 // pred_check
      _
    $region19: #{tpu_custom_call.1} parent=1 // pred_check_branch
      %25 = sbr.rel (0) target = $region21
    $region20: #{tpu_custom_call.1} parent=1 // pred_region
      _
    $region21: #{tpu_custom_call.1} parent=1 // pred_fallthru
      _
    // Predicated region
    $region22: #{tpu_custom_call.1} parent=1 // pred_check
      _
    $region23: #{tpu_custom_call.1} parent=1 // pred_check_branch
      %27 = sbr.rel (0) target = $region25
    $region24: #{tpu_custom_call.1} parent=1 // pred_region
      _
    $region25: #{tpu_custom_call.1} parent=1 // pred_fallthru
      _
    // Predicated region
    $region26: #{tpu_custom_call.1} parent=1 // pred_check
      _
    $region27: #{tpu_custom_call.1} parent=1 // pred_check_branch
      %29 = sbr.rel (0) target = $region29
    $region28: #{tpu_custom_call.1} parent=1 // pred_region
      _
    $region29: #{tpu_custom_call.1} parent=1 // pred_fallthru
      _
    // Predicated region
    $region30: #{tpu_custom_call.1} parent=1 // pred_check
      _
    $region31: #{tpu_custom_call.1} parent=1 // pred_check_branch
      %31 = sbr.rel (0) target = $region33
    $region32: #{tpu_custom_call.1} parent=1 // pred_region
      _
    $region33: #{tpu_custom_call.1} parent=1 // pred_fallthru
      _
    // Predicated region
    $region34: #{tpu_custom_call.1} parent=1 // pred_check
      _
    $region35: #{tpu_custom_call.1} parent=1 // pred_check_branch
      %33 = sbr.rel (0) target = $region37
    $region36: #{tpu_custom_call.1} parent=1 // pred_region
      %35 = vsyncadd [#allocation3], 0
      %s36 = sshll.u32 %s8, 4
      %s37 = int_to_ptr.hbm [resolvable:$true] %s36
      %s38 = sshll.u32 [#allocation2], 4
      %s39 = int_to_ptr.vmem [resolvable:$true] %s38
      %44 = dma.hbm_to_vmem [thread:$0]  %s37, 16384, %s39, [#allocation3], 256, 256, 16
    $region37: #{tpu_custom_call.1} parent=1 // pred_fallthru
      _
    // Predicated region
    $region38: #{tpu_custom_call.1} parent=1 // pred_check
      _
    $region39: #{tpu_custom_call.1} parent=1 // pred_check_branch
      %46 = sbr.rel (0) target = $region41
    $region40: #{tpu_custom_call.1} parent=1 // pred_region
      %48 = dma.done [#allocation3], 16384
    $region41: #{tpu_custom_call.1} parent=1 // pred_fallthru
      _
    %v49 = vld [vmem:[%s0] sm:$0xff]
    %v50 = vld [vmem:[%s2] sm:$0xff]
    %v51 = vld [vmem:[%s2 + $0x8] sm:$0xff]
    %v52 = vld [vmem:[%s2 + $0x10] sm:$0xff]
    %v53 = vld [vmem:[%s2 + $0x18] sm:$0xff]
    %v54 = vld [vmem:[%s2 + $0x20] sm:$0xff]
    %v55 = vld [vmem:[%s2 + $0x28] sm:$0xff]
    %v56 = vld [vmem:[%s2 + $0x30] sm:$0xff]
    %v57 = vld [vmem:[%s2 + $0x38] sm:$0xff]
    %v58 = vld [vmem:[%s3] sm:$0x1]
    %v60 = vperm.slane %v58, 0
    %vm62 = vcmask 523264
    %v64 = vsel %vm62, %v49, 0
    %66 = vmatpush.msra.mxu0 0.0
    %67 = vmatpush.msra.mxu0 0.0
    %68 = vmatpush.msra.mxu0 0.0
    %69 = vmatpush.msra.mxu0 0.0
    %70 = vmatpush.msra.mxu0 0.0
    %71 = vmatpush.msra.mxu0 0.0
    %72 = vmatpush.msra.mxu0 0.0
    %73 = vmatpush.msra.mxu0 0.0
    %74 = vmatpush.msra.mxu0 %v57
    %75 = vmatpush.msra.mxu0 %v56
    %76 = vmatpush.msra.mxu0 %v55
    %77 = vmatpush.msra.mxu0 %v54
    %78 = vmatpush.msra.mxu0 %v53
    %79 = vmatpush.msra.mxu0 %v52
    %80 = vmatpush.msra.mxu0 %v51
    %81 = vmatpush.msra.mxu0 %v50
    %82 = vmatmul.f32.gmra.mxu0 %v64
    %v83 = vpop.f32.mrf.mxu0
    %v84 = vadd.f32 %v60, %v83
    %85 = vdwg.mxu0
    %v86 = vld [vmem:[%s1] sm:$0xff]
    %v87 = vld [vmem:[%s6] sm:$0xff]
    %v88 = vld [vmem:[%s6 + $0x8] sm:$0xff]
    %v89 = vld [vmem:[%s6 + $0x10] sm:$0xff]
    %v90 = vld [vmem:[%s6 + $0x18] sm:$0xff]
    %v91 = vld [vmem:[%s6 + $0x20] sm:$0xff]
    %v92 = vld [vmem:[%s6 + $0x28] sm:$0xff]
    %v93 = vld [vmem:[%s6 + $0x30] sm:$0xff]
    %v94 = vld [vmem:[%s6 + $0x38] sm:$0xff]
    %v95 = vld [vmem:[%s6 + $0x40] sm:$0xff]
    %v96 = vld [vmem:[%s6 + $0x48] sm:$0xff]
    %v97 = vld [vmem:[%s6 + $0x50] sm:$0xff]
    %v98 = vld [vmem:[%s6 + $0x58] sm:$0xff]
    %v99 = vld [vmem:[%s6 + $0x60] sm:$0xff]
    %v100 = vld [vmem:[%s6 + $0x68] sm:$0xff]
    %v101 = vld [vmem:[%s6 + $0x70] sm:$0xff]
    %v102 = vld [vmem:[%s6 + $0x78] sm:$0xff]
    %v103 = vld [vmem:[%s6 + $0x80] sm:$0xff]
    %v104 = vld [vmem:[%s6 + $0x88] sm:$0xff]
    %v105 = vld [vmem:[%s6 + $0x90] sm:$0xff]
    %v106 = vld [vmem:[%s6 + $0x98] sm:$0xff]
    %v107 = vld [vmem:[%s6 + $0xa0] sm:$0xff]
    %v108 = vld [vmem:[%s6 + $0xa8] sm:$0xff]
    %v109 = vld [vmem:[%s6 + $0xb0] sm:$0xff]
    %v110 = vld [vmem:[%s6 + $0xb8] sm:$0xff]
    %v111 = vld [vmem:[%s6 + $0xc0] sm:$0xff]
    %v112 = vld [vmem:[%s6 + $0xc8] sm:$0xff]
    %v113 = vld [vmem:[%s6 + $0xd0] sm:$0xff]
    %v114 = vld [vmem:[%s6 + $0xd8] sm:$0xff]
    %v115 = vld [vmem:[%s6 + $0xe0] sm:$0xff]
    %v116 = vld [vmem:[%s6 + $0xe8] sm:$0xff]
    %v117 = vld [vmem:[%s6 + $0xf0] sm:$0xff]
    %v118 = vld [vmem:[%s6 + $0xf8] sm:$0xff]
    %v119 = vld [vmem:[%s6 + $0x100] sm:$0xff]
    %v120 = vld [vmem:[%s6 + $0x108] sm:$0xff]
    %v121 = vld [vmem:[%s6 + $0x110] sm:$0xff]
    %v122 = vld [vmem:[%s6 + $0x118] sm:$0xff]
    %v123 = vld [vmem:[%s6 + $0x120] sm:$0xff]
    %v124 = vld [vmem:[%s6 + $0x128] sm:$0xff]
    %v125 = vld [vmem:[%s6 + $0x130] sm:$0xff]
    %v126 = vld [vmem:[%s6 + $0x138] sm:$0xff]
    %v127 = vld [vmem:[%s6 + $0x140] sm:$0xff]
    %v128 = vld [vmem:[%s6 + $0x148] sm:$0xff]
    %v129 = vld [vmem:[%s6 + $0x150] sm:$0xff]
    %v130 = vld [vmem:[%s6 + $0x158] sm:$0xff]
    %v131 = vld [vmem:[%s6 + $0x160] sm:$0xff]
    %v132 = vld [vmem:[%s6 + $0x168] sm:$0xff]
    %v133 = vld [vmem:[%s6 + $0x170] sm:$0xff]
    %v134 = vld [vmem:[%s6 + $0x178] sm:$0xff]
    %v135 = vld [vmem:[%s6 + $0x180] sm:$0xff]
    %v136 = vld [vmem:[%s6 + $0x188] sm:$0xff]
    %v137 = vld [vmem:[%s6 + $0x190] sm:$0xff]
    %v138 = vld [vmem:[%s6 + $0x198] sm:$0xff]
    %v139 = vld [vmem:[%s6 + $0x1a0] sm:$0xff]
    %v140 = vld [vmem:[%s6 + $0x1a8] sm:$0xff]
    %v141 = vld [vmem:[%s6 + $0x1b0] sm:$0xff]
    %v142 = vld [vmem:[%s6 + $0x1b8] sm:$0xff]
    %v143 = vld [vmem:[%s6 + $0x1c0] sm:$0xff]
    %v144 = vld [vmem:[%s6 + $0x1c8] sm:$0xff]
    %v145 = vld [vmem:[%s6 + $0x1d0] sm:$0xff]
    %v146 = vld [vmem:[%s6 + $0x1d8] sm:$0xff]
    %v147 = vld [vmem:[%s6 + $0x1e0] sm:$0xff]
    %v148 = vld [vmem:[%s6 + $0x1e8] sm:$0xff]
    %v149 = vld [vmem:[%s6 + $0x1f0] sm:$0xff]
    %v150 = vld [vmem:[%s6 + $0x1f8] sm:$0xff]
    %v151 = vld [vmem:[%s7] sm:$0xff]
    %v152 = vld [vmem:[%s7 + $0x8] sm:$0xff]
    %v153 = vld [vmem:[%s7 + $0x10] sm:$0xff]
    %v154 = vld [vmem:[%s7 + $0x18] sm:$0xff]
    %v155 = vld [vmem:[%s7 + $0x20] sm:$0xff]
    %v156 = vld [vmem:[%s7 + $0x28] sm:$0xff]
    %v157 = vld [vmem:[%s7 + $0x30] sm:$0xff]
    %v158 = vld [vmem:[%s7 + $0x38] sm:$0xff]
    %v159 = vld [vmem:[%s7 + $0x40] sm:$0xff]
    %v160 = vld [vmem:[%s7 + $0x48] sm:$0xff]
    %v161 = vld [vmem:[%s7 + $0x50] sm:$0xff]
    %v162 = vld [vmem:[%s7 + $0x58] sm:$0xff]
    %v163 = vld [vmem:[%s7 + $0x60] sm:$0xff]
    %v164 = vld [vmem:[%s7 + $0x68] sm:$0xff]
    %v165 = vld [vmem:[%s7 + $0x70] sm:$0xff]
    %v166 = vld [vmem:[%s7 + $0x78] sm:$0xff]
    %v167 = vld [vmem:[%s4] sm:$0xff]
    %v168 = vld [vmem:[%s4 + $0x8] sm:$0xff]
    %v169 = vld [vmem:[%s4 + $0x10] sm:$0xff]
    %v170 = vld [vmem:[%s4 + $0x18] sm:$0xff]
    %v171 = vld [vmem:[%s4 + $0x40] sm:$0xff]
    %v172 = vld [vmem:[%s4 + $0x48] sm:$0xff]
    %v173 = vld [vmem:[%s4 + $0x50] sm:$0xff]
    %v174 = vld [vmem:[%s4 + $0x58] sm:$0xff]
    %v175 = vld [vmem:[%s4 + $0x80] sm:$0xff]
    %v176 = vld [vmem:[%s4 + $0x88] sm:$0xff]
    %v177 = vld [vmem:[%s4 + $0x90] sm:$0xff]
    %v178 = vld [vmem:[%s4 + $0x98] sm:$0xff]
    %v179 = vld [vmem:[%s4 + $0xc0] sm:$0xff]
    %v180 = vld [vmem:[%s4 + $0xc8] sm:$0xff]
    %v181 = vld [vmem:[%s4 + $0xd0] sm:$0xff]
    %v182 = vld [vmem:[%s4 + $0xd8] sm:$0xff]
    %v183 = vld [vmem:[%s5] sm:$0xf]
    %v185 = vperm.slane %v183, 0
    %v186 = vperm.slane %v183, 1
    %v187 = vperm.slane %v183, 2
    %v188 = vperm.slane %v183, 3
    %vm193 = vcmask 261120
    %v195 = vsel %vm193, %v86, 0
    %197 = vmatpush.msra.mxu0 0.0
    %198 = vmatpush.msra.mxu0 0.0
    %199 = vmatpush.msra.mxu0 0.0
    %200 = vmatpush.msra.mxu0 0.0
    %201 = vmatpush.msra.mxu0 0.0
    %202 = vmatpush.msra.mxu0 0.0
    %203 = vmatpush.msra.mxu0 0.0
    %204 = vmatpush.msra.mxu0 0.0
    %205 = vmatpush.msra.mxu0 0.0
    %206 = vmatpush.msra.mxu0 0.0
    %207 = vmatpush.msra.mxu0 0.0
    %208 = vmatpush.msra.mxu0 0.0
    %209 = vmatpush.msra.mxu0 %v179
    %210 = vmatpush.msra.mxu0 %v175
    %211 = vmatpush.msra.mxu0 %v171
    %212 = vmatpush.msra.mxu0 %v167
    %213 = vmatmul.f32.gmra.mxu0 %v195
    %v214 = vpop.f32.mrf.mxu0
    %v215 = vadd.f32 %v185, %v214
    %216 = vdwg.mxu0
    %217 = vmatpush.msra.mxu0 0.0
    %218 = vmatpush.msra.mxu0 0.0
    %219 = vmatpush.msra.mxu0 0.0
    %220 = vmatpush.msra.mxu0 0.0
    %221 = vmatpush.msra.mxu0 0.0
    %222 = vmatpush.msra.mxu0 0.0
    %223 = vmatpush.msra.mxu0 0.0
    %224 = vmatpush.msra.mxu0 0.0
    %225 = vmatpush.msra.mxu0 0.0
    %226 = vmatpush.msra.mxu0 0.0
    %227 = vmatpush.msra.mxu0 0.0
    %228 = vmatpush.msra.mxu0 0.0
    %229 = vmatpush.msra.mxu0 %v180
    %230 = vmatpush.msra.mxu0 %v176
    %231 = vmatpush.msra.mxu0 %v172
    %232 = vmatpush.msra.mxu0 %v168
    %233 = vmatmul.f32.gmra.mxu0 %v195
    %v234 = vpop.f32.mrf.mxu0
    %v235 = vadd.f32 %v186, %v234
    %236 = vdwg.mxu0
    %237 = vmatpush.msra.mxu0 0.0
    %238 = vmatpush.msra.mxu0 0.0
    %239 = vmatpush.msra.mxu0 0.0
    %240 = vmatpush.msra.mxu0 0.0
    %241 = vmatpush.msra.mxu0 0.0
    %242 = vmatpush.msra.mxu0 0.0
    %243 = vmatpush.msra.mxu0 0.0
    %244 = vmatpush.msra.mxu0 0.0
    %245 = vmatpush.msra.mxu0 0.0
    %246 = vmatpush.msra.mxu0 0.0
    %247 = vmatpush.msra.mxu0 0.0
    %248 = vmatpush.msra.mxu0 0.0
    %249 = vmatpush.msra.mxu0 %v181
    %250 = vmatpush.msra.mxu0 %v177
    %251 = vmatpush.msra.mxu0 %v173
    %252 = vmatpush.msra.mxu0 %v169
    %253 = vmatmul.f32.gmra.mxu0 %v195
    %v254 = vpop.f32.mrf.mxu0
    %v255 = vadd.f32 %v187, %v254
    %256 = vdwg.mxu0
    %257 = vmatpush.msra.mxu0 0.0
    %258 = vmatpush.msra.mxu0 0.0
    %259 = vmatpush.msra.mxu0 0.0
    %260 = vmatpush.msra.mxu0 0.0
    %261 = vmatpush.msra.mxu0 0.0
    %262 = vmatpush.msra.mxu0 0.0
    %263 = vmatpush.msra.mxu0 0.0
    %264 = vmatpush.msra.mxu0 0.0
    %265 = vmatpush.msra.mxu0 0.0
    %266 = vmatpush.msra.mxu0 0.0
    %267 = vmatpush.msra.mxu0 0.0
    %268 = vmatpush.msra.mxu0 0.0
    %269 = vmatpush.msra.mxu0 %v182
    %270 = vmatpush.msra.mxu0 %v178
    %271 = vmatpush.msra.mxu0 %v174
    %272 = vmatpush.msra.mxu0 %v170
    %273 = vmatmul.f32.gmra.mxu0 %v195
    %v274 = vpop.f32.mrf.mxu0
    %v275 = vadd.f32 %v188, %v274
    %276 = vdwg.mxu0
    %v277 = vmul.f32 %v215, 0.2
    %v278 = vmul.f32 %v235, 0.2
    %v279 = vmul.f32 %v255, 0.2
    %v280 = vmul.f32 %v275, 0.2
    %v281 = vmax.f32 %v215, %v277
    %v282 = vmax.f32 %v235, %v278
    %v283 = vmax.f32 %v255, %v279
    %v284 = vmax.f32 %v275, %v280
    %285 = vmatpush.msra.mxu0 %v102
    %286 = vmatpush.msra.mxu0 %v101
    %287 = vmatpush.msra.mxu0 %v100
    %288 = vmatpush.msra.mxu0 %v99
    %289 = vmatpush.msra.mxu0 %v98
    %290 = vmatpush.msra.mxu0 %v97
    %291 = vmatpush.msra.mxu0 %v96
    %292 = vmatpush.msra.mxu0 %v95
    %293 = vmatpush.msra.mxu0 %v94
    %294 = vmatpush.msra.mxu0 %v93
    %295 = vmatpush.msra.mxu0 %v92
    %296 = vmatpush.msra.mxu0 %v91
    %297 = vmatpush.msra.mxu0 %v90
    %298 = vmatpush.msra.mxu0 %v89
    %299 = vmatpush.msra.mxu0 %v88
    %300 = vmatpush.msra.mxu0 %v87
    %301 = vmatmul.f32.gmra.mxu0 %v281
    %v302 = vpop.f32.mrf.mxu0
    %v303 = vadd.f32 0.0, %v302
    %304 = vdwg.mxu0
    %305 = vmatpush.msra.mxu0 %v118
    %306 = vmatpush.msra.mxu0 %v117
    %307 = vmatpush.msra.mxu0 %v116
    %308 = vmatpush.msra.mxu0 %v115
    %309 = vmatpush.msra.mxu0 %v114
    %310 = vmatpush.msra.mxu0 %v113
    %311 = vmatpush.msra.mxu0 %v112
    %312 = vmatpush.msra.mxu0 %v111
    %313 = vmatpush.msra.mxu0 %v110
    %314 = vmatpush.msra.mxu0 %v109
    %315 = vmatpush.msra.mxu0 %v108
    %316 = vmatpush.msra.mxu0 %v107
    %317 = vmatpush.msra.mxu0 %v106
    %318 = vmatpush.msra.mxu0 %v105
    %319 = vmatpush.msra.mxu0 %v104
    %320 = vmatpush.msra.mxu0 %v103
    %321 = vmatmul.f32.gmra.mxu0 %v282
    %v322 = vpop.f32.mrf.mxu0
    %v323 = vadd.f32 %v303, %v322
    %324 = vdwg.mxu0
    %325 = vmatpush.msra.mxu0 %v134
    %326 = vmatpush.msra.mxu0 %v133
    %327 = vmatpush.msra.mxu0 %v132
    %328 = vmatpush.msra.mxu0 %v131
    %329 = vmatpush.msra.mxu0 %v130
    %330 = vmatpush.msra.mxu0 %v129
    %331 = vmatpush.msra.mxu0 %v128
    %332 = vmatpush.msra.mxu0 %v127
    %333 = vmatpush.msra.mxu0 %v126
    %334 = vmatpush.msra.mxu0 %v125
    %335 = vmatpush.msra.mxu0 %v124
    %336 = vmatpush.msra.mxu0 %v123
    %337 = vmatpush.msra.mxu0 %v122
    %338 = vmatpush.msra.mxu0 %v121
    %339 = vmatpush.msra.mxu0 %v120
    %340 = vmatpush.msra.mxu0 %v119
    %341 = vmatmul.f32.gmra.mxu0 %v283
    %v342 = vpop.f32.mrf.mxu0
    %v343 = vadd.f32 %v323, %v342
    %344 = vdwg.mxu0
    %345 = vmatpush.msra.mxu0 %v150
    %346 = vmatpush.msra.mxu0 %v149
    %347 = vmatpush.msra.mxu0 %v148
    %348 = vmatpush.msra.mxu0 %v147
    %349 = vmatpush.msra.mxu0 %v146
    %350 = vmatpush.msra.mxu0 %v145
    %351 = vmatpush.msra.mxu0 %v144
    %352 = vmatpush.msra.mxu0 %v143
    %353 = vmatpush.msra.mxu0 %v142
    %354 = vmatpush.msra.mxu0 %v141
    %355 = vmatpush.msra.mxu0 %v140
    %356 = vmatpush.msra.mxu0 %v139
    %357 = vmatpush.msra.mxu0 %v138
    %358 = vmatpush.msra.mxu0 %v137
    %359 = vmatpush.msra.mxu0 %v136
    %360 = vmatpush.msra.mxu0 %v135
    %361 = vmatmul.f32.gmra.mxu0 %v284
    %v362 = vpop.f32.mrf.mxu0
    %v363 = vadd.f32 %v343, %v362
    %364 = vdwg.mxu0
    %v366 = vsel %vm193, %v363, 0
    %368 = vmatpush.msra.mxu0 0.0
    %369 = vmatpush.msra.mxu0 0.0
    %370 = vmatpush.msra.mxu0 0.0
    %371 = vmatpush.msra.mxu0 0.0
    %372 = vmatpush.msra.mxu0 0.0
    %373 = vmatpush.msra.mxu0 0.0
    %374 = vmatpush.msra.mxu0 0.0
    %375 = vmatpush.msra.mxu0 0.0
    %376 = vmatpush.msra.mxu0 0.0
    %377 = vmatpush.msra.mxu0 0.0
    %378 = vmatpush.msra.mxu0 0.0
    %379 = vmatpush.msra.mxu0 0.0
    %380 = vmatpush.msra.mxu0 %v163
    %381 = vmatpush.msra.mxu0 %v159
    %382 = vmatpush.msra.mxu0 %v155
    %383 = vmatpush.msra.mxu0 %v151
    %384 = vmatmul.f32.gmra.mxu0 %v366
    %v385 = vpop.f32.mrf.mxu0
    %v386 = vadd.f32 0.0, %v385
    %387 = vdwg.mxu0
    %388 = vmatpush.msra.mxu0 0.0
    %389 = vmatpush.msra.mxu0 0.0
    %390 = vmatpush.msra.mxu0 0.0
    %391 = vmatpush.msra.mxu0 0.0
    %392 = vmatpush.msra.mxu0 0.0
    %393 = vmatpush.msra.mxu0 0.0
    %394 = vmatpush.msra.mxu0 0.0
    %395 = vmatpush.msra.mxu0 0.0
    %396 = vmatpush.msra.mxu0 0.0
    %397 = vmatpush.msra.mxu0 0.0
    %398 = vmatpush.msra.mxu0 0.0
    %399 = vmatpush.msra.mxu0 0.0
    %400 = vmatpush.msra.mxu0 %v164
    %401 = vmatpush.msra.mxu0 %v160
    %402 = vmatpush.msra.mxu0 %v156
    %403 = vmatpush.msra.mxu0 %v152
    %404 = vmatmul.f32.gmra.mxu0 %v366
    %v405 = vpop.f32.mrf.mxu0
    %v406 = vadd.f32 0.0, %v405
    %407 = vdwg.mxu0
    %408 = vmatpush.msra.mxu0 0.0
    %409 = vmatpush.msra.mxu0 0.0
    %410 = vmatpush.msra.mxu0 0.0
    %411 = vmatpush.msra.mxu0 0.0
    %412 = vmatpush.msra.mxu0 0.0
    %413 = vmatpush.msra.mxu0 0.0
    %414 = vmatpush.msra.mxu0 0.0
    %415 = vmatpush.msra.mxu0 0.0
    %416 = vmatpush.msra.mxu0 0.0
    %417 = vmatpush.msra.mxu0 0.0
    %418 = vmatpush.msra.mxu0 0.0
    %419 = vmatpush.msra.mxu0 0.0
    %420 = vmatpush.msra.mxu0 %v165
    %421 = vmatpush.msra.mxu0 %v161
    %422 = vmatpush.msra.mxu0 %v157
    %423 = vmatpush.msra.mxu0 %v153
    %424 = vmatmul.f32.gmra.mxu0 %v366
    %v425 = vpop.f32.mrf.mxu0
    %v426 = vadd.f32 0.0, %v425
    %427 = vdwg.mxu0
    %428 = vmatpush.msra.mxu0 0.0
    %429 = vmatpush.msra.mxu0 0.0
    %430 = vmatpush.msra.mxu0 0.0
    %431 = vmatpush.msra.mxu0 0.0
    %432 = vmatpush.msra.mxu0 0.0
    %433 = vmatpush.msra.mxu0 0.0
    %434 = vmatpush.msra.mxu0 0.0
    %435 = vmatpush.msra.mxu0 0.0
    %436 = vmatpush.msra.mxu0 0.0
    %437 = vmatpush.msra.mxu0 0.0
    %438 = vmatpush.msra.mxu0 0.0
    %439 = vmatpush.msra.mxu0 0.0
    %440 = vmatpush.msra.mxu0 %v166
    %441 = vmatpush.msra.mxu0 %v162
    %442 = vmatpush.msra.mxu0 %v158
    %443 = vmatpush.msra.mxu0 %v154
    %444 = vmatmul.f32.gmra.mxu0 %v366
    %v445 = vpop.f32.mrf.mxu0
    %v446 = vadd.f32 0.0, %v445
    %447 = vdwg.mxu0
    %v448 = vsub.f32 %v281, %v386
    %v449 = vsub.f32 %v282, %v406
    %v450 = vsub.f32 %v283, %v426
    %v451 = vsub.f32 %v284, %v446
    %v452 = vmul.f32 %v448, %v448
    %v453 = vmul.f32 %v449, %v449
    %v454 = vmul.f32 %v450, %v450
    %v455 = vmul.f32 %v451, %v451
    %456 = vmatpush.msra.mxu0 %v102
    %457 = vmatpush.msra.mxu0 %v101
    %458 = vmatpush.msra.mxu0 %v100
    %459 = vmatpush.msra.mxu0 %v99
    %460 = vmatpush.msra.mxu0 %v98
    %461 = vmatpush.msra.mxu0 %v97
    %462 = vmatpush.msra.mxu0 %v96
    %463 = vmatpush.msra.mxu0 %v95
    %464 = vmatpush.msra.mxu0 %v94
    %465 = vmatpush.msra.mxu0 %v93
    %466 = vmatpush.msra.mxu0 %v92
    %467 = vmatpush.msra.mxu0 %v91
    %468 = vmatpush.msra.mxu0 %v90
    %469 = vmatpush.msra.mxu0 %v89
    %470 = vmatpush.msra.mxu0 %v88
    %471 = vmatpush.msra.mxu0 %v87
    %472 = vmatmul.f32.gmra.mxu0 %v452
    %v473 = vpop.f32.mrf.mxu0
    %v474 = vadd.f32 1e-05, %v473
    %475 = vdwg.mxu0
    %476 = vmatpush.msra.mxu0 %v118
    %477 = vmatpush.msra.mxu0 %v117
    %478 = vmatpush.msra.mxu0 %v116
    %479 = vmatpush.msra.mxu0 %v115
    %480 = vmatpush.msra.mxu0 %v114
    %481 = vmatpush.msra.mxu0 %v113
    %482 = vmatpush.msra.mxu0 %v112
    %483 = vmatpush.msra.mxu0 %v111
    %484 = vmatpush.msra.mxu0 %v110
    %485 = vmatpush.msra.mxu0 %v109
    %486 = vmatpush.msra.mxu0 %v108
    %487 = vmatpush.msra.mxu0 %v107
    %488 = vmatpush.msra.mxu0 %v106
    %489 = vmatpush.msra.mxu0 %v105
    %490 = vmatpush.msra.mxu0 %v104
    %491 = vmatpush.msra.mxu0 %v103
    %492 = vmatmul.f32.gmra.mxu0 %v453
    %v493 = vpop.f32.mrf.mxu0
    %v494 = vadd.f32 %v474, %v493
    %495 = vdwg.mxu0
    %496 = vmatpush.msra.mxu0 %v134
    %497 = vmatpush.msra.mxu0 %v133
    %498 = vmatpush.msra.mxu0 %v132
    %499 = vmatpush.msra.mxu0 %v131
    %500 = vmatpush.msra.mxu0 %v130
    %501 = vmatpush.msra.mxu0 %v129
    %502 = vmatpush.msra.mxu0 %v128
    %503 = vmatpush.msra.mxu0 %v127
    %504 = vmatpush.msra.mxu0 %v126
    %505 = vmatpush.msra.mxu0 %v125
    %506 = vmatpush.msra.mxu0 %v124
    %507 = vmatpush.msra.mxu0 %v123
    %508 = vmatpush.msra.mxu0 %v122
    %509 = vmatpush.msra.mxu0 %v121
    %510 = vmatpush.msra.mxu0 %v120
    %511 = vmatpush.msra.mxu0 %v119
    %512 = vmatmul.f32.gmra.mxu0 %v454
    %v513 = vpop.f32.mrf.mxu0
    %v514 = vadd.f32 %v494, %v513
    %515 = vdwg.mxu0
    %516 = vmatpush.msra.mxu0 %v150
    %517 = vmatpush.msra.mxu0 %v149
    %518 = vmatpush.msra.mxu0 %v148
    %519 = vmatpush.msra.mxu0 %v147
    %520 = vmatpush.msra.mxu0 %v146
    %521 = vmatpush.msra.mxu0 %v145
    %522 = vmatpush.msra.mxu0 %v144
    %523 = vmatpush.msra.mxu0 %v143
    %524 = vmatpush.msra.mxu0 %v142
    %525 = vmatpush.msra.mxu0 %v141
    %526 = vmatpush.msra.mxu0 %v140
    %527 = vmatpush.msra.mxu0 %v139
    %528 = vmatpush.msra.mxu0 %v138
    %529 = vmatpush.msra.mxu0 %v137
    %530 = vmatpush.msra.mxu0 %v136
    %531 = vmatpush.msra.mxu0 %v135
    %532 = vmatmul.f32.gmra.mxu0 %v455
    %v533 = vpop.f32.mrf.mxu0
    %v534 = vadd.f32 %v514, %v533
    %535 = vdwg.mxu0
    %v536 = vrsqrt.pop %v534
    %v537 = vmul.f32 %v536, %v534
    %v538 = vmul.f32 %v537, %v536
    %v539 = vmul.f32 0.5, %v538
    %v540 = vsub.f32 1.5, %v539
    %v541 = vmul.f32 %v536, %v540
    %vm542 = vweird.f32 %v534
    %vm543 = vweird.f32 %v536
    %vm544 = vmor %vm542, %vm543
    %v545 = vsel %vm544, %v536, %v541
    %v546 = vmul.f32 %v545, %v84
    %v548 = vsel %vm193, %v546, 0
    %550 = vmatpush.msra.mxu0 0.0
    %551 = vmatpush.msra.mxu0 0.0
    %552 = vmatpush.msra.mxu0 0.0
    %553 = vmatpush.msra.mxu0 0.0
    %554 = vmatpush.msra.mxu0 0.0
    %555 = vmatpush.msra.mxu0 0.0
    %556 = vmatpush.msra.mxu0 0.0
    %557 = vmatpush.msra.mxu0 0.0
    %558 = vmatpush.msra.mxu0 0.0
    %559 = vmatpush.msra.mxu0 0.0
    %560 = vmatpush.msra.mxu0 0.0
    %561 = vmatpush.msra.mxu0 0.0
    %562 = vmatpush.msra.mxu0 %v163
    %563 = vmatpush.msra.mxu0 %v159
    %564 = vmatpush.msra.mxu0 %v155
    %565 = vmatpush.msra.mxu0 %v151
    %566 = vmatmul.f32.gmra.mxu0 %v548
    %v567 = vpop.f32.mrf.mxu0
    %v568 = vadd.f32 0.0, %v567
    %569 = vdwg.mxu0
    %570 = vmatpush.msra.mxu0 0.0
    %571 = vmatpush.msra.mxu0 0.0
    %572 = vmatpush.msra.mxu0 0.0
    %573 = vmatpush.msra.mxu0 0.0
    %574 = vmatpush.msra.mxu0 0.0
    %575 = vmatpush.msra.mxu0 0.0
    %576 = vmatpush.msra.mxu0 0.0
    %577 = vmatpush.msra.mxu0 0.0
    %578 = vmatpush.msra.mxu0 0.0
    %579 = vmatpush.msra.mxu0 0.0
    %580 = vmatpush.msra.mxu0 0.0
    %581 = vmatpush.msra.mxu0 0.0
    %582 = vmatpush.msra.mxu0 %v164
    %583 = vmatpush.msra.mxu0 %v160
    %584 = vmatpush.msra.mxu0 %v156
    %585 = vmatpush.msra.mxu0 %v152
    %586 = vmatmul.f32.gmra.mxu0 %v548
    %v587 = vpop.f32.mrf.mxu0
    %v588 = vadd.f32 0.0, %v587
    %589 = vdwg.mxu0
    %590 = vmatpush.msra.mxu0 0.0
    %591 = vmatpush.msra.mxu0 0.0
    %592 = vmatpush.msra.mxu0 0.0
    %593 = vmatpush.msra.mxu0 0.0
    %594 = vmatpush.msra.mxu0 0.0
    %595 = vmatpush.msra.mxu0 0.0
    %596 = vmatpush.msra.mxu0 0.0
    %597 = vmatpush.msra.mxu0 0.0
    %598 = vmatpush.msra.mxu0 0.0
    %599 = vmatpush.msra.mxu0 0.0
    %600 = vmatpush.msra.mxu0 0.0
    %601 = vmatpush.msra.mxu0 0.0
    %602 = vmatpush.msra.mxu0 %v165
    %603 = vmatpush.msra.mxu0 %v161
    %604 = vmatpush.msra.mxu0 %v157
    %605 = vmatpush.msra.mxu0 %v153
    %606 = vmatmul.f32.gmra.mxu0 %v548
    %v607 = vpop.f32.mrf.mxu0
    %v608 = vadd.f32 0.0, %v607
    %609 = vdwg.mxu0
    %610 = vmatpush.msra.mxu0 0.0
    %611 = vmatpush.msra.mxu0 0.0
    %612 = vmatpush.msra.mxu0 0.0
    %613 = vmatpush.msra.mxu0 0.0
    %614 = vmatpush.msra.mxu0 0.0
    %615 = vmatpush.msra.mxu0 0.0
    %616 = vmatpush.msra.mxu0 0.0
    %617 = vmatpush.msra.mxu0 0.0
    %618 = vmatpush.msra.mxu0 0.0
    %619 = vmatpush.msra.mxu0 0.0
    %620 = vmatpush.msra.mxu0 0.0
    %621 = vmatpush.msra.mxu0 0.0
    %622 = vmatpush.msra.mxu0 %v166
    %623 = vmatpush.msra.mxu0 %v162
    %624 = vmatpush.msra.mxu0 %v158
    %625 = vmatpush.msra.mxu0 %v154
    %626 = vmatmul.f32.gmra.mxu0 %v548
    %v627 = vpop.f32.mrf.mxu0
    %v628 = vadd.f32 0.0, %v627
    %629 = vdwg.mxu0
    %v630 = vmul.f32 %v448, %v568
    %v631 = vmul.f32 %v449, %v588
    %v632 = vmul.f32 %v450, %v608
    %v633 = vmul.f32 %v451, %v628
    %635 = vrot.lane.b32.xlu0 %v84, 96
    %v636 = vpop.permute.xlu0 %635
    %v637 = vsel %vm193, %v636, 0
    %639 = vmatpush.msra.mxu0 0.0
    %640 = vmatpush.msra.mxu0 0.0
    %641 = vmatpush.msra.mxu0 0.0
    %642 = vmatpush.msra.mxu0 0.0
    %643 = vmatpush.msra.mxu0 0.0
    %644 = vmatpush.msra.mxu0 0.0
    %645 = vmatpush.msra.mxu0 0.0
    %646 = vmatpush.msra.mxu0 0.0
    %647 = vmatpush.msra.mxu0 0.0
    %648 = vmatpush.msra.mxu0 0.0
    %649 = vmatpush.msra.mxu0 0.0
    %650 = vmatpush.msra.mxu0 0.0
    %651 = vmatpush.msra.mxu0 %v163
    %652 = vmatpush.msra.mxu0 %v159
    %653 = vmatpush.msra.mxu0 %v155
    %654 = vmatpush.msra.mxu0 %v151
    %655 = vmatmul.f32.gmra.mxu0 %v637
    %v656 = vpop.f32.mrf.mxu0
    %v657 = vadd.f32 0.0, %v656
    %658 = vdwg.mxu0
    %659 = vmatpush.msra.mxu0 0.0
    %660 = vmatpush.msra.mxu0 0.0
    %661 = vmatpush.msra.mxu0 0.0
    %662 = vmatpush.msra.mxu0 0.0
    %663 = vmatpush.msra.mxu0 0.0
    %664 = vmatpush.msra.mxu0 0.0
    %665 = vmatpush.msra.mxu0 0.0
    %666 = vmatpush.msra.mxu0 0.0
    %667 = vmatpush.msra.mxu0 0.0
    %668 = vmatpush.msra.mxu0 0.0
    %669 = vmatpush.msra.mxu0 0.0
    %670 = vmatpush.msra.mxu0 0.0
    %671 = vmatpush.msra.mxu0 %v164
    %672 = vmatpush.msra.mxu0 %v160
    %673 = vmatpush.msra.mxu0 %v156
    %674 = vmatpush.msra.mxu0 %v152
    %675 = vmatmul.f32.gmra.mxu0 %v637
    %v676 = vpop.f32.mrf.mxu0
    %v677 = vadd.f32 0.0, %v676
    %678 = vdwg.mxu0
    %679 = vmatpush.msra.mxu0 0.0
    %680 = vmatpush.msra.mxu0 0.0
    %681 = vmatpush.msra.mxu0 0.0
    %682 = vmatpush.msra.mxu0 0.0
    %683 = vmatpush.msra.mxu0 0.0
    %684 = vmatpush.msra.mxu0 0.0
    %685 = vmatpush.msra.mxu0 0.0
    %686 = vmatpush.msra.mxu0 0.0
    %687 = vmatpush.msra.mxu0 0.0
    %688 = vmatpush.msra.mxu0 0.0
    %689 = vmatpush.msra.mxu0 0.0
    %690 = vmatpush.msra.mxu0 0.0
    %691 = vmatpush.msra.mxu0 %v165
    %692 = vmatpush.msra.mxu0 %v161
    %693 = vmatpush.msra.mxu0 %v157
    %694 = vmatpush.msra.mxu0 %v153
    %695 = vmatmul.f32.gmra.mxu0 %v637
    %v696 = vpop.f32.mrf.mxu0
    %v697 = vadd.f32 0.0, %v696
    %698 = vdwg.mxu0
    %699 = vmatpush.msra.mxu0 0.0
    %700 = vmatpush.msra.mxu0 0.0
    %701 = vmatpush.msra.mxu0 0.0
    %702 = vmatpush.msra.mxu0 0.0
    %703 = vmatpush.msra.mxu0 0.0
    %704 = vmatpush.msra.mxu0 0.0
    %705 = vmatpush.msra.mxu0 0.0
    %706 = vmatpush.msra.mxu0 0.0
    %707 = vmatpush.msra.mxu0 0.0
    %708 = vmatpush.msra.mxu0 0.0
    %709 = vmatpush.msra.mxu0 0.0
    %710 = vmatpush.msra.mxu0 0.0
    %711 = vmatpush.msra.mxu0 %v166
    %712 = vmatpush.msra.mxu0 %v162
    %713 = vmatpush.msra.mxu0 %v158
    %714 = vmatpush.msra.mxu0 %v154
    %715 = vmatmul.f32.gmra.mxu0 %v637
    %v716 = vpop.f32.mrf.mxu0
    %v717 = vadd.f32 0.0, %v716
    %718 = vdwg.mxu0
    %v719 = vadd.f32 %v630, %v657
    %v720 = vadd.f32 %v631, %v677
    %v721 = vadd.f32 %v632, %v697
    %v722 = vadd.f32 %v633, %v717
    %v723 = vpack.c.bf16 %v719, %v719
    %v724 = vpack.c.bf16 %v720, %v720
    %v725 = vpack.c.bf16 %v721, %v721
    %v726 = vpack.c.bf16 %v722, %v722
    %v727 = vld [vmem:[#allocation2] sm:$0xff]
    %v728 = vld [vmem:[#allocation2 + $0x8] sm:$0xff]
    %v729 = vld [vmem:[#allocation2 + $0x10] sm:$0xff]
    %v730 = vld [vmem:[#allocation2 + $0x18] sm:$0xff]
    %v731 = vld [vmem:[#allocation2 + $0x20] sm:$0xff]
    %v732 = vld [vmem:[#allocation2 + $0x28] sm:$0xff]
    %v733 = vld [vmem:[#allocation2 + $0x30] sm:$0xff]
    %v734 = vld [vmem:[#allocation2 + $0x38] sm:$0xff]
    %v735 = vld [vmem:[#allocation2 + $0x40] sm:$0xff]
    %v736 = vld [vmem:[#allocation2 + $0x48] sm:$0xff]
    %v737 = vld [vmem:[#allocation2 + $0x50] sm:$0xff]
    %v738 = vld [vmem:[#allocation2 + $0x58] sm:$0xff]
    %v739 = vld [vmem:[#allocation2 + $0x60] sm:$0xff]
    %v740 = vld [vmem:[#allocation2 + $0x68] sm:$0xff]
    %v741 = vld [vmem:[#allocation2 + $0x70] sm:$0xff]
    %v742 = vld [vmem:[#allocation2 + $0x78] sm:$0xff]
    %v743 = vld [vmem:[#allocation2 + $0x80] sm:$0xff]
    %v744 = vld [vmem:[#allocation2 + $0x88] sm:$0xff]
    %v745 = vld [vmem:[#allocation2 + $0x90] sm:$0xff]
    %v746 = vld [vmem:[#allocation2 + $0x98] sm:$0xff]
    %v747 = vld [vmem:[#allocation2 + $0xa0] sm:$0xff]
    %v748 = vld [vmem:[#allocation2 + $0xa8] sm:$0xff]
    %v749 = vld [vmem:[#allocation2 + $0xb0] sm:$0xff]
    %v750 = vld [vmem:[#allocation2 + $0xb8] sm:$0xff]
    %v751 = vld [vmem:[#allocation2 + $0xc0] sm:$0xff]
    %v752 = vld [vmem:[#allocation2 + $0xc8] sm:$0xff]
    %v753 = vld [vmem:[#allocation2 + $0xd0] sm:$0xff]
    %v754 = vld [vmem:[#allocation2 + $0xd8] sm:$0xff]
    %v755 = vld [vmem:[#allocation2 + $0xe0] sm:$0xff]
    %v756 = vld [vmem:[#allocation2 + $0xe8] sm:$0xff]
    %v757 = vld [vmem:[#allocation2 + $0xf0] sm:$0xff]
    %v758 = vld [vmem:[#allocation2 + $0xf8] sm:$0xff]
    %v759 = vld [vmem:[#allocation2 + $0x100] sm:$0xff]
    %v760 = vld [vmem:[#allocation2 + $0x108] sm:$0xff]
    %v761 = vld [vmem:[#allocation2 + $0x110] sm:$0xff]
    %v762 = vld [vmem:[#allocation2 + $0x118] sm:$0xff]
    %v763 = vld [vmem:[#allocation2 + $0x120] sm:$0xff]
    %v764 = vld [vmem:[#allocation2 + $0x128] sm:$0xff]
    %v765 = vld [vmem:[#allocation2 + $0x130] sm:$0xff]
    %v766 = vld [vmem:[#allocation2 + $0x138] sm:$0xff]
    %v767 = vld [vmem:[#allocation2 + $0x140] sm:$0xff]
    %v768 = vld [vmem:[#allocation2 + $0x148] sm:$0xff]
    %v769 = vld [vmem:[#allocation2 + $0x150] sm:$0xff]
    %v770 = vld [vmem:[#allocation2 + $0x158] sm:$0xff]
    %v771 = vld [vmem:[#allocation2 + $0x160] sm:$0xff]
    %v772 = vld [vmem:[#allocation2 + $0x168] sm:$0xff]
    %v773 = vld [vmem:[#allocation2 + $0x170] sm:$0xff]
    %v774 = vld [vmem:[#allocation2 + $0x178] sm:$0xff]
    %v775 = vld [vmem:[#allocation2 + $0x180] sm:$0xff]
    %v776 = vld [vmem:[#allocation2 + $0x188] sm:$0xff]
    %v777 = vld [vmem:[#allocation2 + $0x190] sm:$0xff]
    %v778 = vld [vmem:[#allocation2 + $0x198] sm:$0xff]
    %v779 = vld [vmem:[#allocation2 + $0x1a0] sm:$0xff]
    %v780 = vld [vmem:[#allocation2 + $0x1a8] sm:$0xff]
    %v781 = vld [vmem:[#allocation2 + $0x1b0] sm:$0xff]
    %v782 = vld [vmem:[#allocation2 + $0x1b8] sm:$0xff]
    %v783 = vld [vmem:[#allocation2 + $0x1c0] sm:$0xff]
    %v784 = vld [vmem:[#allocation2 + $0x1c8] sm:$0xff]
    %v785 = vld [vmem:[#allocation2 + $0x1d0] sm:$0xff]
    %v786 = vld [vmem:[#allocation2 + $0x1d8] sm:$0xff]
    %v787 = vld [vmem:[#allocation2 + $0x1e0] sm:$0xff]
    %v788 = vld [vmem:[#allocation2 + $0x1e8] sm:$0xff]
    %v789 = vld [vmem:[#allocation2 + $0x1f0] sm:$0xff]
    %v790 = vld [vmem:[#allocation2 + $0x1f8] sm:$0xff]
    %v791 = vld [vmem:[#allocation2 + $0x200] sm:$0xff]
    %v792 = vld [vmem:[#allocation2 + $0x208] sm:$0xff]
    %v793 = vld [vmem:[#allocation2 + $0x210] sm:$0xff]
    %v794 = vld [vmem:[#allocation2 + $0x218] sm:$0xff]
    %v795 = vld [vmem:[#allocation2 + $0x220] sm:$0xff]
    %v796 = vld [vmem:[#allocation2 + $0x228] sm:$0xff]
    %v797 = vld [vmem:[#allocation2 + $0x230] sm:$0xff]
    %v798 = vld [vmem:[#allocation2 + $0x238] sm:$0xff]
    %v799 = vld [vmem:[#allocation2 + $0x240] sm:$0xff]
    %v800 = vld [vmem:[#allocation2 + $0x248] sm:$0xff]
    %v801 = vld [vmem:[#allocation2 + $0x250] sm:$0xff]
    %v802 = vld [vmem:[#allocation2 + $0x258] sm:$0xff]
    %v803 = vld [vmem:[#allocation2 + $0x260] sm:$0xff]
    %v804 = vld [vmem:[#allocation2 + $0x268] sm:$0xff]
    %v805 = vld [vmem:[#allocation2 + $0x270] sm:$0xff]
    %v806 = vld [vmem:[#allocation2 + $0x278] sm:$0xff]
    %v807 = vld [vmem:[#allocation2 + $0x280] sm:$0xff]
    %v808 = vld [vmem:[#allocation2 + $0x288] sm:$0xff]
    %v809 = vld [vmem:[#allocation2 + $0x290] sm:$0xff]
    %v810 = vld [vmem:[#allocation2 + $0x298] sm:$0xff]
    %v811 = vld [vmem:[#allocation2 + $0x2a0] sm:$0xff]
    %v812 = vld [vmem:[#allocation2 + $0x2a8] sm:$0xff]
    %v813 = vld [vmem:[#allocation2 + $0x2b0] sm:$0xff]
    %v814 = vld [vmem:[#allocation2 + $0x2b8] sm:$0xff]
    %v815 = vld [vmem:[#allocation2 + $0x2c0] sm:$0xff]
    %v816 = vld [vmem:[#allocation2 + $0x2c8] sm:$0xff]
    %v817 = vld [vmem:[#allocation2 + $0x2d0] sm:$0xff]
    %v818 = vld [vmem:[#allocation2 + $0x2d8] sm:$0xff]
    %v819 = vld [vmem:[#allocation2 + $0x2e0] sm:$0xff]
    %v820 = vld [vmem:[#allocation2 + $0x2e8] sm:$0xff]
    %v821 = vld [vmem:[#allocation2 + $0x2f0] sm:$0xff]
    %v822 = vld [vmem:[#allocation2 + $0x2f8] sm:$0xff]
    %v823 = vld [vmem:[#allocation2 + $0x300] sm:$0xff]
    %v824 = vld [vmem:[#allocation2 + $0x308] sm:$0xff]
    %v825 = vld [vmem:[#allocation2 + $0x310] sm:$0xff]
    %v826 = vld [vmem:[#allocation2 + $0x318] sm:$0xff]
    %v827 = vld [vmem:[#allocation2 + $0x320] sm:$0xff]
    %v828 = vld [vmem:[#allocation2 + $0x328] sm:$0xff]
    %v829 = vld [vmem:[#allocation2 + $0x330] sm:$0xff]
    %v830 = vld [vmem:[#allocation2 + $0x338] sm:$0xff]
    %v831 = vld [vmem:[#allocation2 + $0x340] sm:$0xff]
    %v832 = vld [vmem:[#allocation2 + $0x348] sm:$0xff]
    %v833 = vld [vmem:[#allocation2 + $0x350] sm:$0xff]
    %v834 = vld [vmem:[#allocation2 + $0x358] sm:$0xff]
    %v835 = vld [vmem:[#allocation2 + $0x360] sm:$0xff]
    %v836 = vld [vmem:[#allocation2 + $0x368] sm:$0xff]
    %v837 = vld [vmem:[#allocation2 + $0x370] sm:$0xff]
    %v838 = vld [vmem:[#allocation2 + $0x378] sm:$0xff]
    %v839 = vld [vmem:[#allocation2 + $0x380] sm:$0xff]
    %v840 = vld [vmem:[#allocation2 + $0x388] sm:$0xff]
    %v841 = vld [vmem:[#allocation2 + $0x390] sm:$0xff]
    %v842 = vld [vmem:[#allocation2 + $0x398] sm:$0xff]
    %v843 = vld [vmem:[#allocation2 + $0x3a0] sm:$0xff]
    %v844 = vld [vmem:[#allocation2 + $0x3a8] sm:$0xff]
    %v845 = vld [vmem:[#allocation2 + $0x3b0] sm:$0xff]
    %v846 = vld [vmem:[#allocation2 + $0x3b8] sm:$0xff]
    %v847 = vld [vmem:[#allocation2 + $0x3c0] sm:$0xff]
    %v848 = vld [vmem:[#allocation2 + $0x3c8] sm:$0xff]
    %v849 = vld [vmem:[#allocation2 + $0x3d0] sm:$0xff]
    %v850 = vld [vmem:[#allocation2 + $0x3d8] sm:$0xff]
    %v851 = vld [vmem:[#allocation2 + $0x3e0] sm:$0xff]
    %v852 = vld [vmem:[#allocation2 + $0x3e8] sm:$0xff]
    %v853 = vld [vmem:[#allocation2 + $0x3f0] sm:$0xff]
    %v854 = vld [vmem:[#allocation2 + $0x3f8] sm:$0xff]
    %v855 = vld [vmem:[%s4 + $0x20] sm:$0xff]
    %v856 = vld [vmem:[%s4 + $0x28] sm:$0xff]
    %v857 = vld [vmem:[%s4 + $0x30] sm:$0xff]
    %v858 = vld [vmem:[%s4 + $0x38] sm:$0xff]
    %v859 = vld [vmem:[%s4 + $0x60] sm:$0xff]
    %v860 = vld [vmem:[%s4 + $0x68] sm:$0xff]
    %v861 = vld [vmem:[%s4 + $0x70] sm:$0xff]
    %v862 = vld [vmem:[%s4 + $0x78] sm:$0xff]
    %v863 = vld [vmem:[%s4 + $0xa0] sm:$0xff]
    %v864 = vld [vmem:[%s4 + $0xa8] sm:$0xff]
    %v865 = vld [vmem:[%s4 + $0xb0] sm:$0xff]
    %v866 = vld [vmem:[%s4 + $0xb8] sm:$0xff]
    %v867 = vld [vmem:[%s4 + $0xe0] sm:$0xff]
    %v868 = vld [vmem:[%s4 + $0xe8] sm:$0xff]
    %v869 = vld [vmem:[%s4 + $0xf0] sm:$0xff]
    %v870 = vld [vmem:[%s4 + $0xf8] sm:$0xff]
    %871 = vmatpush.msra.mxu0 0.0
    %872 = vmatpush.msra.mxu0 0.0
    %873 = vmatpush.msra.mxu0 0.0
    %874 = vmatpush.msra.mxu0 0.0
    %875 = vmatpush.msra.mxu0 0.0
    %876 = vmatpush.msra.mxu0 0.0
    %877 = vmatpush.msra.mxu0 0.0
    %878 = vmatpush.msra.mxu0 0.0
    %879 = vmatpush.msra.mxu0 0.0
    %880 = vmatpush.msra.mxu0 0.0
    %881 = vmatpush.msra.mxu0 0.0
    %882 = vmatpush.msra.mxu0 0.0
    %883 = vmatpush.msra.mxu0 %v867
    %884 = vmatpush.msra.mxu0 %v863
    %885 = vmatpush.msra.mxu0 %v859
    %886 = vmatpush.msra.mxu0 %v855
    %887 = vmatmul.f32.gmra.mxu0 %v195
    %v888 = vpop.f32.mrf.mxu0
    %v889 = vadd.f32 0.0, %v888
    %890 = vdwg.mxu0
    %891 = vmatpush.msra.mxu0 0.0
    %892 = vmatpush.msra.mxu0 0.0
    %893 = vmatpush.msra.mxu0 0.0
    %894 = vmatpush.msra.mxu0 0.0
    %895 = vmatpush.msra.mxu0 0.0
    %896 = vmatpush.msra.mxu0 0.0
    %897 = vmatpush.msra.mxu0 0.0
    %898 = vmatpush.msra.mxu0 0.0
    %899 = vmatpush.msra.mxu0 0.0
    %900 = vmatpush.msra.mxu0 0.0
    %901 = vmatpush.msra.mxu0 0.0
    %902 = vmatpush.msra.mxu0 0.0
    %903 = vmatpush.msra.mxu0 %v868
    %904 = vmatpush.msra.mxu0 %v864
    %905 = vmatpush.msra.mxu0 %v860
    %906 = vmatpush.msra.mxu0 %v856
    %907 = vmatmul.f32.gmra.mxu0 %v195
    %v908 = vpop.f32.mrf.mxu0
    %v909 = vadd.f32 0.0, %v908
    %910 = vdwg.mxu0
    %911 = vmatpush.msra.mxu0 0.0
    %912 = vmatpush.msra.mxu0 0.0
    %913 = vmatpush.msra.mxu0 0.0
    %914 = vmatpush.msra.mxu0 0.0
    %915 = vmatpush.msra.mxu0 0.0
    %916 = vmatpush.msra.mxu0 0.0
    %917 = vmatpush.msra.mxu0 0.0
    %918 = vmatpush.msra.mxu0 0.0
    %919 = vmatpush.msra.mxu0 0.0
    %920 = vmatpush.msra.mxu0 0.0
    %921 = vmatpush.msra.mxu0 0.0
    %922 = vmatpush.msra.mxu0 0.0
    %923 = vmatpush.msra.mxu0 %v869
    %924 = vmatpush.msra.mxu0 %v865
    %925 = vmatpush.msra.mxu0 %v861
    %926 = vmatpush.msra.mxu0 %v857
    %927 = vmatmul.f32.gmra.mxu0 %v195
    %v928 = vpop.f32.mrf.mxu0
    %v929 = vadd.f32 0.0, %v928
    %930 = vdwg.mxu0
    %931 = vmatpush.msra.mxu0 0.0
    %932 = vmatpush.msra.mxu0 0.0
    %933 = vmatpush.msra.mxu0 0.0
    %934 = vmatpush.msra.mxu0 0.0
    %935 = vmatpush.msra.mxu0 0.0
    %936 = vmatpush.msra.mxu0 0.0
    %937 = vmatpush.msra.mxu0 0.0
    %938 = vmatpush.msra.mxu0 0.0
    %939 = vmatpush.msra.mxu0 0.0
    %940 = vmatpush.msra.mxu0 0.0
    %941 = vmatpush.msra.mxu0 0.0
    %942 = vmatpush.msra.mxu0 0.0
    %943 = vmatpush.msra.mxu0 %v870
    %944 = vmatpush.msra.mxu0 %v866
    %945 = vmatpush.msra.mxu0 %v862
    %946 = vmatpush.msra.mxu0 %v858
    %947 = vmatmul.f32.gmra.mxu0 %v195
    %v948 = vpop.f32.mrf.mxu0
    %v949 = vadd.f32 0.0, %v948
    %950 = vdwg.mxu0
    %v1079 = vunpack.c.l.b16 %v727
    %v1080 = vunpack.c.h.b16 %v727
    %v1081 = vunpack.c.l.b16 %v728
    %v1082 = vunpack.c.h.b16 %v728
    %v1083 = vunpack.c.l.b16 %v729
    %v1084 = vunpack.c.h.b16 %v729
    %v1085 = vunpack.c.l.b16 %v730
    %v1086 = vunpack.c.h.b16 %v730
    %v1087 = vunpack.c.l.b16 %v731
    %v1088 = vunpack.c.h.b16 %v731
    %v1089 = vunpack.c.l.b16 %v732
    %v1090 = vunpack.c.h.b16 %v732
    %v1091 = vunpack.c.l.b16 %v733
    %v1092 = vunpack.c.h.b16 %v733
    %v1093 = vunpack.c.l.b16 %v734
    %v1094 = vunpack.c.h.b16 %v734
    %v1095 = vunpack.c.l.b16 %v735
    %v1096 = vunpack.c.h.b16 %v735
    %v1097 = vunpack.c.l.b16 %v736
    %v1098 = vunpack.c.h.b16 %v736
    %v1099 = vunpack.c.l.b16 %v737
    %v1100 = vunpack.c.h.b16 %v737
    %v1101 = vunpack.c.l.b16 %v738
    %v1102 = vunpack.c.h.b16 %v738
    %v1103 = vunpack.c.l.b16 %v739
    %v1104 = vunpack.c.h.b16 %v739
    %v1105 = vunpack.c.l.b16 %v740
    %v1106 = vunpack.c.h.b16 %v740
    %v1107 = vunpack.c.l.b16 %v741
    %v1108 = vunpack.c.h.b16 %v741
    %v1109 = vunpack.c.l.b16 %v742
    %v1110 = vunpack.c.h.b16 %v742
    %v1111 = vunpack.c.l.b16 %v743
    %v1112 = vunpack.c.h.b16 %v743
    %v1113 = vunpack.c.l.b16 %v744
    %v1114 = vunpack.c.h.b16 %v744
    %v1115 = vunpack.c.l.b16 %v745
    %v1116 = vunpack.c.h.b16 %v745
    %v1117 = vunpack.c.l.b16 %v746
    %v1118 = vunpack.c.h.b16 %v746
    %v1119 = vunpack.c.l.b16 %v747
    %v1120 = vunpack.c.h.b16 %v747
    %v1121 = vunpack.c.l.b16 %v748
    %v1122 = vunpack.c.h.b16 %v748
    %v1123 = vunpack.c.l.b16 %v749
    %v1124 = vunpack.c.h.b16 %v749
    %v1125 = vunpack.c.l.b16 %v750
    %v1126 = vunpack.c.h.b16 %v750
    %v1127 = vunpack.c.l.b16 %v751
    %v1128 = vunpack.c.h.b16 %v751
    %v1129 = vunpack.c.l.b16 %v752
    %v1130 = vunpack.c.h.b16 %v752
    %v1131 = vunpack.c.l.b16 %v753
    %v1132 = vunpack.c.h.b16 %v753
    %v1133 = vunpack.c.l.b16 %v754
    %v1134 = vunpack.c.h.b16 %v754
    %v1135 = vunpack.c.l.b16 %v755
    %v1136 = vunpack.c.h.b16 %v755
    %v1137 = vunpack.c.l.b16 %v756
    %v1138 = vunpack.c.h.b16 %v756
    %v1139 = vunpack.c.l.b16 %v757
    %v1140 = vunpack.c.h.b16 %v757
    %v1141 = vunpack.c.l.b16 %v758
    %v1142 = vunpack.c.h.b16 %v758
    %v1143 = vunpack.c.l.b16 %v759
    %v1144 = vunpack.c.h.b16 %v759
    %v1145 = vunpack.c.l.b16 %v760
    %v1146 = vunpack.c.h.b16 %v760
    %v1147 = vunpack.c.l.b16 %v761
    %v1148 = vunpack.c.h.b16 %v761
    %v1149 = vunpack.c.l.b16 %v762
    %v1150 = vunpack.c.h.b16 %v762
    %v1151 = vunpack.c.l.b16 %v763
    %v1152 = vunpack.c.h.b16 %v763
    %v1153 = vunpack.c.l.b16 %v764
    %v1154 = vunpack.c.h.b16 %v764
    %v1155 = vunpack.c.l.b16 %v765
    %v1156 = vunpack.c.h.b16 %v765
    %v1157 = vunpack.c.l.b16 %v766
    %v1158 = vunpack.c.h.b16 %v766
    %v1159 = vunpack.c.l.b16 %v767
    %v1160 = vunpack.c.h.b16 %v767
    %v1161 = vunpack.c.l.b16 %v768
    %v1162 = vunpack.c.h.b16 %v768
    %v1163 = vunpack.c.l.b16 %v769
    %v1164 = vunpack.c.h.b16 %v769
    %v1165 = vunpack.c.l.b16 %v770
    %v1166 = vunpack.c.h.b16 %v770
    %v1167 = vunpack.c.l.b16 %v771
    %v1168 = vunpack.c.h.b16 %v771
    %v1169 = vunpack.c.l.b16 %v772
    %v1170 = vunpack.c.h.b16 %v772
    %v1171 = vunpack.c.l.b16 %v773
    %v1172 = vunpack.c.h.b16 %v773
    %v1173 = vunpack.c.l.b16 %v774
    %v1174 = vunpack.c.h.b16 %v774
    %v1175 = vunpack.c.l.b16 %v775
    %v1176 = vunpack.c.h.b16 %v775
    %v1177 = vunpack.c.l.b16 %v776
    %v1178 = vunpack.c.h.b16 %v776
    %v1179 = vunpack.c.l.b16 %v777
    %v1180 = vunpack.c.h.b16 %v777
    %v1181 = vunpack.c.l.b16 %v778
    %v1182 = vunpack.c.h.b16 %v778
    %v1183 = vunpack.c.l.b16 %v779
    %v1184 = vunpack.c.h.b16 %v779
    %v1185 = vunpack.c.l.b16 %v780
    %v1186 = vunpack.c.h.b16 %v780
    %v1187 = vunpack.c.l.b16 %v781
    %v1188 = vunpack.c.h.b16 %v781
    %v1189 = vunpack.c.l.b16 %v782
    %v1190 = vunpack.c.h.b16 %v782
    %v1191 = vunpack.c.l.b16 %v783
    %v1192 = vunpack.c.h.b16 %v783
    %v1193 = vunpack.c.l.b16 %v784
    %v1194 = vunpack.c.h.b16 %v784
    %v1195 = vunpack.c.l.b16 %v785
    %v1196 = vunpack.c.h.b16 %v785
    %v1197 = vunpack.c.l.b16 %v786
    %v1198 = vunpack.c.h.b16 %v786
    %v1199 = vunpack.c.l.b16 %v787
    %v1200 = vunpack.c.h.b16 %v787
    %v1201 = vunpack.c.l.b16 %v788
    %v1202 = vunpack.c.h.b16 %v788
    %v1203 = vunpack.c.l.b16 %v789
    %v1204 = vunpack.c.h.b16 %v789
    %v1205 = vunpack.c.l.b16 %v790
    %v1206 = vunpack.c.h.b16 %v790
    %v1207 = vunpack.c.l.b16 %v791
    %v1208 = vunpack.c.h.b16 %v791
    %v1209 = vunpack.c.l.b16 %v792
    %v1210 = vunpack.c.h.b16 %v792
    %v1211 = vunpack.c.l.b16 %v793
    %v1212 = vunpack.c.h.b16 %v793
    %v1213 = vunpack.c.l.b16 %v794
    %v1214 = vunpack.c.h.b16 %v794
    %v1215 = vunpack.c.l.b16 %v795
    %v1216 = vunpack.c.h.b16 %v795
    %v1217 = vunpack.c.l.b16 %v796
    %v1218 = vunpack.c.h.b16 %v796
    %v1219 = vunpack.c.l.b16 %v797
    %v1220 = vunpack.c.h.b16 %v797
    %v1221 = vunpack.c.l.b16 %v798
    %v1222 = vunpack.c.h.b16 %v798
    %v1223 = vunpack.c.l.b16 %v799
    %v1224 = vunpack.c.h.b16 %v799
    %v1225 = vunpack.c.l.b16 %v800
    %v1226 = vunpack.c.h.b16 %v800
    %v1227 = vunpack.c.l.b16 %v801
    %v1228 = vunpack.c.h.b16 %v801
    %v1229 = vunpack.c.l.b16 %v802
    %v1230 = vunpack.c.h.b16 %v802
    %v1231 = vunpack.c.l.b16 %v803
    %v1232 = vunpack.c.h.b16 %v803
    %v1233 = vunpack.c.l.b16 %v804
    %v1234 = vunpack.c.h.b16 %v804
    %v1235 = vunpack.c.l.b16 %v805
    %v1236 = vunpack.c.h.b16 %v805
    %v1237 = vunpack.c.l.b16 %v806
    %v1238 = vunpack.c.h.b16 %v806
    %v1239 = vunpack.c.l.b16 %v807
    %v1240 = vunpack.c.h.b16 %v807
    %v1241 = vunpack.c.l.b16 %v808
    %v1242 = vunpack.c.h.b16 %v808
    %v1243 = vunpack.c.l.b16 %v809
    %v1244 = vunpack.c.h.b16 %v809
    %v1245 = vunpack.c.l.b16 %v810
    %v1246 = vunpack.c.h.b16 %v810
    %v1247 = vunpack.c.l.b16 %v811
    %v1248 = vunpack.c.h.b16 %v811
    %v1249 = vunpack.c.l.b16 %v812
    %v1250 = vunpack.c.h.b16 %v812
    %v1251 = vunpack.c.l.b16 %v813
    %v1252 = vunpack.c.h.b16 %v813
    %v1253 = vunpack.c.l.b16 %v814
    %v1254 = vunpack.c.h.b16 %v814
    %v1255 = vunpack.c.l.b16 %v815
    %v1256 = vunpack.c.h.b16 %v815
    %v1257 = vunpack.c.l.b16 %v816
    %v1258 = vunpack.c.h.b16 %v816
    %v1259 = vunpack.c.l.b16 %v817
    %v1260 = vunpack.c.h.b16 %v817
    %v1261 = vunpack.c.l.b16 %v818
    %v1262 = vunpack.c.h.b16 %v818
    %v1263 = vunpack.c.l.b16 %v819
    %v1264 = vunpack.c.h.b16 %v819
    %v1265 = vunpack.c.l.b16 %v820
    %v1266 = vunpack.c.h.b16 %v820
    %v1267 = vunpack.c.l.b16 %v821
    %v1268 = vunpack.c.h.b16 %v821
    %v1269 = vunpack.c.l.b16 %v822
    %v1270 = vunpack.c.h.b16 %v822
    %v1271 = vunpack.c.l.b16 %v823
    %v1272 = vunpack.c.h.b16 %v823
    %v1273 = vunpack.c.l.b16 %v824
    %v1274 = vunpack.c.h.b16 %v824
    %v1275 = vunpack.c.l.b16 %v825
    %v1276 = vunpack.c.h.b16 %v825
    %v1277 = vunpack.c.l.b16 %v826
    %v1278 = vunpack.c.h.b16 %v826
    %v1279 = vunpack.c.l.b16 %v827
    %v1280 = vunpack.c.h.b16 %v827
    %v1281 = vunpack.c.l.b16 %v828
    %v1282 = vunpack.c.h.b16 %v828
    %v1283 = vunpack.c.l.b16 %v829
    %v1284 = vunpack.c.h.b16 %v829
    %v1285 = vunpack.c.l.b16 %v830
    %v1286 = vunpack.c.h.b16 %v830
    %v1287 = vunpack.c.l.b16 %v831
    %v1288 = vunpack.c.h.b16 %v831
    %v1289 = vunpack.c.l.b16 %v832
    %v1290 = vunpack.c.h.b16 %v832
    %v1291 = vunpack.c.l.b16 %v833
    %v1292 = vunpack.c.h.b16 %v833
    %v1293 = vunpack.c.l.b16 %v834
    %v1294 = vunpack.c.h.b16 %v834
    %v1295 = vunpack.c.l.b16 %v835
    %v1296 = vunpack.c.h.b16 %v835
    %v1297 = vunpack.c.l.b16 %v836
    %v1298 = vunpack.c.h.b16 %v836
    %v1299 = vunpack.c.l.b16 %v837
    %v1300 = vunpack.c.h.b16 %v837
    %v1301 = vunpack.c.l.b16 %v838
    %v1302 = vunpack.c.h.b16 %v838
    %v1303 = vunpack.c.l.b16 %v839
    %v1304 = vunpack.c.h.b16 %v839
    %v1305 = vunpack.c.l.b16 %v840
    %v1306 = vunpack.c.h.b16 %v840
    %v1307 = vunpack.c.l.b16 %v841
    %v1308 = vunpack.c.h.b16 %v841
    %v1309 = vunpack.c.l.b16 %v842
    %v1310 = vunpack.c.h.b16 %v842
    %v1311 = vunpack.c.l.b16 %v843
    %v1312 = vunpack.c.h.b16 %v843
    %v1313 = vunpack.c.l.b16 %v844
    %v1314 = vunpack.c.h.b16 %v844
    %v1315 = vunpack.c.l.b16 %v845
    %v1316 = vunpack.c.h.b16 %v845
    %v1317 = vunpack.c.l.b16 %v846
    %v1318 = vunpack.c.h.b16 %v846
    %v1319 = vunpack.c.l.b16 %v847
    %v1320 = vunpack.c.h.b16 %v847
    %v1321 = vunpack.c.l.b16 %v848
    %v1322 = vunpack.c.h.b16 %v848
    %v1323 = vunpack.c.l.b16 %v849
    %v1324 = vunpack.c.h.b16 %v849
    %v1325 = vunpack.c.l.b16 %v850
    %v1326 = vunpack.c.h.b16 %v850
    %v1327 = vunpack.c.l.b16 %v851
    %v1328 = vunpack.c.h.b16 %v851
    %v1329 = vunpack.c.l.b16 %v852
    %v1330 = vunpack.c.h.b16 %v852
    %v1331 = vunpack.c.l.b16 %v853
    %v1332 = vunpack.c.h.b16 %v853
    %v1333 = vunpack.c.l.b16 %v854
    %v1334 = vunpack.c.h.b16 %v854
    %v1335 = vpack.c.b16 %v1083, %v1079
    %v1336 = vpack.c.b16 %v1084, %v1080
    %v1337 = vpack.c.b16 %v1085, %v1081
    %v1338 = vpack.c.b16 %v1086, %v1082
    %v1339 = vpack.c.b16 %v1091, %v1087
    %v1340 = vpack.c.b16 %v1092, %v1088
    %v1341 = vpack.c.b16 %v1093, %v1089
    %v1342 = vpack.c.b16 %v1094, %v1090
    %v1343 = vpack.c.b16 %v1099, %v1095
    %v1344 = vpack.c.b16 %v1100, %v1096
    %v1345 = vpack.c.b16 %v1101, %v1097
    %v1346 = vpack.c.b16 %v1102, %v1098
    %v1347 = vpack.c.b16 %v1107, %v1103
    %v1348 = vpack.c.b16 %v1108, %v1104
    %v1349 = vpack.c.b16 %v1109, %v1105
    %v1350 = vpack.c.b16 %v1110, %v1106
    %v1351 = vpack.c.b16 %v1115, %v1111
    %v1352 = vpack.c.b16 %v1116, %v1112
    %v1353 = vpack.c.b16 %v1117, %v1113
    %v1354 = vpack.c.b16 %v1118, %v1114
    %v1355 = vpack.c.b16 %v1123, %v1119
    %v1356 = vpack.c.b16 %v1124, %v1120
    %v1357 = vpack.c.b16 %v1125, %v1121
    %v1358 = vpack.c.b16 %v1126, %v1122
    %v1359 = vpack.c.b16 %v1131, %v1127
    %v1360 = vpack.c.b16 %v1132, %v1128
    %v1361 = vpack.c.b16 %v1133, %v1129
    %v1362 = vpack.c.b16 %v1134, %v1130
    %v1363 = vpack.c.b16 %v1139, %v1135
    %v1364 = vpack.c.b16 %v1140, %v1136
    %v1365 = vpack.c.b16 %v1141, %v1137
    %v1366 = vpack.c.b16 %v1142, %v1138
    %v1367 = vpack.c.b16 %v1147, %v1143
    %v1368 = vpack.c.b16 %v1148, %v1144
    %v1369 = vpack.c.b16 %v1149, %v1145
    %v1370 = vpack.c.b16 %v1150, %v1146
    %v1371 = vpack.c.b16 %v1155, %v1151
    %v1372 = vpack.c.b16 %v1156, %v1152
    %v1373 = vpack.c.b16 %v1157, %v1153
    %v1374 = vpack.c.b16 %v1158, %v1154
    %v1375 = vpack.c.b16 %v1163, %v1159
    %v1376 = vpack.c.b16 %v1164, %v1160
    %v1377 = vpack.c.b16 %v1165, %v1161
    %v1378 = vpack.c.b16 %v1166, %v1162
    %v1379 = vpack.c.b16 %v1171, %v1167
    %v1380 = vpack.c.b16 %v1172, %v1168
    %v1381 = vpack.c.b16 %v1173, %v1169
    %v1382 = vpack.c.b16 %v1174, %v1170
    %v1383 = vpack.c.b16 %v1179, %v1175
    %v1384 = vpack.c.b16 %v1180, %v1176
    %v1385 = vpack.c.b16 %v1181, %v1177
    %v1386 = vpack.c.b16 %v1182, %v1178
    %v1387 = vpack.c.b16 %v1187, %v1183
    %v1388 = vpack.c.b16 %v1188, %v1184
    %v1389 = vpack.c.b16 %v1189, %v1185
    %v1390 = vpack.c.b16 %v1190, %v1186
    %v1391 = vpack.c.b16 %v1195, %v1191
    %v1392 = vpack.c.b16 %v1196, %v1192
    %v1393 = vpack.c.b16 %v1197, %v1193
    %v1394 = vpack.c.b16 %v1198, %v1194
    %v1395 = vpack.c.b16 %v1203, %v1199
    %v1396 = vpack.c.b16 %v1204, %v1200
    %v1397 = vpack.c.b16 %v1205, %v1201
    %v1398 = vpack.c.b16 %v1206, %v1202
    %v1399 = vpack.c.b16 %v1211, %v1207
    %v1400 = vpack.c.b16 %v1212, %v1208
    %v1401 = vpack.c.b16 %v1213, %v1209
    %v1402 = vpack.c.b16 %v1214, %v1210
    %v1403 = vpack.c.b16 %v1219, %v1215
    %v1404 = vpack.c.b16 %v1220, %v1216
    %v1405 = vpack.c.b16 %v1221, %v1217
    %v1406 = vpack.c.b16 %v1222, %v1218
    %v1407 = vpack.c.b16 %v1227, %v1223
    %v1408 = vpack.c.b16 %v1228, %v1224
    %v1409 = vpack.c.b16 %v1229, %v1225
    %v1410 = vpack.c.b16 %v1230, %v1226
    %v1411 = vpack.c.b16 %v1235, %v1231
    %v1412 = vpack.c.b16 %v1236, %v1232
    %v1413 = vpack.c.b16 %v1237, %v1233
    %v1414 = vpack.c.b16 %v1238, %v1234
    %v1415 = vpack.c.b16 %v1243, %v1239
    %v1416 = vpack.c.b16 %v1244, %v1240
    %v1417 = vpack.c.b16 %v1245, %v1241
    %v1418 = vpack.c.b16 %v1246, %v1242
    %v1419 = vpack.c.b16 %v1251, %v1247
    %v1420 = vpack.c.b16 %v1252, %v1248
    %v1421 = vpack.c.b16 %v1253, %v1249
    %v1422 = vpack.c.b16 %v1254, %v1250
    %v1423 = vpack.c.b16 %v1259, %v1255
    %v1424 = vpack.c.b16 %v1260, %v1256
    %v1425 = vpack.c.b16 %v1261, %v1257
    %v1426 = vpack.c.b16 %v1262, %v1258
    %v1427 = vpack.c.b16 %v1267, %v1263
    %v1428 = vpack.c.b16 %v1268, %v1264
    %v1429 = vpack.c.b16 %v1269, %v1265
    %v1430 = vpack.c.b16 %v1270, %v1266
    %v1431 = vpack.c.b16 %v1275, %v1271
    %v1432 = vpack.c.b16 %v1276, %v1272
    %v1433 = vpack.c.b16 %v1277, %v1273
    %v1434 = vpack.c.b16 %v1278, %v1274
    %v1435 = vpack.c.b16 %v1283, %v1279
    %v1436 = vpack.c.b16 %v1284, %v1280
    %v1437 = vpack.c.b16 %v1285, %v1281
    %v1438 = vpack.c.b16 %v1286, %v1282
    %v1439 = vpack.c.b16 %v1291, %v1287
    %v1440 = vpack.c.b16 %v1292, %v1288
    %v1441 = vpack.c.b16 %v1293, %v1289
    %v1442 = vpack.c.b16 %v1294, %v1290
    %v1443 = vpack.c.b16 %v1299, %v1295
    %v1444 = vpack.c.b16 %v1300, %v1296
    %v1445 = vpack.c.b16 %v1301, %v1297
    %v1446 = vpack.c.b16 %v1302, %v1298
    %v1447 = vpack.c.b16 %v1307, %v1303
    %v1448 = vpack.c.b16 %v1308, %v1304
    %v1449 = vpack.c.b16 %v1309, %v1305
    %v1450 = vpack.c.b16 %v1310, %v1306
    %v1451 = vpack.c.b16 %v1315, %v1311
    %v1452 = vpack.c.b16 %v1316, %v1312
    %v1453 = vpack.c.b16 %v1317, %v1313
    %v1454 = vpack.c.b16 %v1318, %v1314
    %v1455 = vpack.c.b16 %v1323, %v1319
    %v1456 = vpack.c.b16 %v1324, %v1320
    %v1457 = vpack.c.b16 %v1325, %v1321
    %v1458 = vpack.c.b16 %v1326, %v1322
    %v1459 = vpack.c.b16 %v1331, %v1327
    %v1460 = vpack.c.b16 %v1332, %v1328
    %v1461 = vpack.c.b16 %v1333, %v1329
    %v1462 = vpack.c.b16 %v1334, %v1330
    %1591 = vmatpush.bf16.msra.mxu0 %v1363
    %1592 = vmatpush.bf16.msra.mxu0 %v1359
    %1593 = vmatpush.bf16.msra.mxu0 %v1355
    %1594 = vmatpush.bf16.msra.mxu0 %v1351
    %1595 = vmatpush.bf16.msra.mxu0 %v1347
    %1596 = vmatpush.bf16.msra.mxu0 %v1343
    %1597 = vmatpush.bf16.msra.mxu0 %v1339
    %1598 = vmatpush.bf16.msra.mxu0 %v1335
    %1599 = vmatmul.bf16.gmra.mxu0 %v723
    %v1600 = vpop.f32.mrf.mxu0
    %v1601 = vadd.f32 %v889, %v1600
    %v1602 = vpop.f32.mrf.mxu0
    %1603 = vdwg.mxu0
    %1604 = vmatpush.bf16.msra.mxu0 %v1395
    %1605 = vmatpush.bf16.msra.mxu0 %v1391
    %1606 = vmatpush.bf16.msra.mxu0 %v1387
    %1607 = vmatpush.bf16.msra.mxu0 %v1383
    %1608 = vmatpush.bf16.msra.mxu0 %v1379
    %1609 = vmatpush.bf16.msra.mxu0 %v1375
    %1610 = vmatpush.bf16.msra.mxu0 %v1371
    %1611 = vmatpush.bf16.msra.mxu0 %v1367
    %1612 = vmatmul.bf16.gmra.mxu0 %v724
    %v1613 = vpop.f32.mrf.mxu0
    %v1614 = vadd.f32 %v1601, %v1613
    %v1615 = vpop.f32.mrf.mxu0
    %1616 = vdwg.mxu0
    %1617 = vmatpush.bf16.msra.mxu0 %v1427
    %1618 = vmatpush.bf16.msra.mxu0 %v1423
    %1619 = vmatpush.bf16.msra.mxu0 %v1419
    %1620 = vmatpush.bf16.msra.mxu0 %v1415
    %1621 = vmatpush.bf16.msra.mxu0 %v1411
    %1622 = vmatpush.bf16.msra.mxu0 %v1407
    %1623 = vmatpush.bf16.msra.mxu0 %v1403
    %1624 = vmatpush.bf16.msra.mxu0 %v1399
    %1625 = vmatmul.bf16.gmra.mxu0 %v725
    %v1626 = vpop.f32.mrf.mxu0
    %v1627 = vadd.f32 %v1614, %v1626
    %v1628 = vpop.f32.mrf.mxu0
    %1629 = vdwg.mxu0
    %1630 = vmatpush.bf16.msra.mxu0 %v1459
    %1631 = vmatpush.bf16.msra.mxu0 %v1455
    %1632 = vmatpush.bf16.msra.mxu0 %v1451
    %1633 = vmatpush.bf16.msra.mxu0 %v1447
    %1634 = vmatpush.bf16.msra.mxu0 %v1443
    %1635 = vmatpush.bf16.msra.mxu0 %v1439
    %1636 = vmatpush.bf16.msra.mxu0 %v1435
    %1637 = vmatpush.bf16.msra.mxu0 %v1431
    %1638 = vmatmul.bf16.gmra.mxu0 %v726
    %v1639 = vpop.f32.mrf.mxu0
    %v1640 = vadd.f32 %v1627, %v1639
    %v1641 = vpop.f32.mrf.mxu0
    %1642 = vdwg.mxu0
    %1643 = vmatpush.bf16.msra.mxu0 %v1364
    %1644 = vmatpush.bf16.msra.mxu0 %v1360
    %1645 = vmatpush.bf16.msra.mxu0 %v1356
    %1646 = vmatpush.bf16.msra.mxu0 %v1352
    %1647 = vmatpush.bf16.msra.mxu0 %v1348
    %1648 = vmatpush.bf16.msra.mxu0 %v1344
    %1649 = vmatpush.bf16.msra.mxu0 %v1340
    %1650 = vmatpush.bf16.msra.mxu0 %v1336
    %1651 = vmatmul.bf16.gmra.mxu0 %v723
    %v1652 = vpop.f32.mrf.mxu0
    %v1653 = vadd.f32 %v909, %v1652
    %v1654 = vpop.f32.mrf.mxu0
    %1655 = vdwg.mxu0
    %1656 = vmatpush.bf16.msra.mxu0 %v1396
    %1657 = vmatpush.bf16.msra.mxu0 %v1392
    %1658 = vmatpush.bf16.msra.mxu0 %v1388
    %1659 = vmatpush.bf16.msra.mxu0 %v1384
    %1660 = vmatpush.bf16.msra.mxu0 %v1380
    %1661 = vmatpush.bf16.msra.mxu0 %v1376
    %1662 = vmatpush.bf16.msra.mxu0 %v1372
    %1663 = vmatpush.bf16.msra.mxu0 %v1368
    %1664 = vmatmul.bf16.gmra.mxu0 %v724
    %v1665 = vpop.f32.mrf.mxu0
    %v1666 = vadd.f32 %v1653, %v1665
    %v1667 = vpop.f32.mrf.mxu0
    %1668 = vdwg.mxu0
    %1669 = vmatpush.bf16.msra.mxu0 %v1428
    %1670 = vmatpush.bf16.msra.mxu0 %v1424
    %1671 = vmatpush.bf16.msra.mxu0 %v1420
    %1672 = vmatpush.bf16.msra.mxu0 %v1416
    %1673 = vmatpush.bf16.msra.mxu0 %v1412
    %1674 = vmatpush.bf16.msra.mxu0 %v1408
    %1675 = vmatpush.bf16.msra.mxu0 %v1404
    %1676 = vmatpush.bf16.msra.mxu0 %v1400
    %1677 = vmatmul.bf16.gmra.mxu0 %v725
    %v1678 = vpop.f32.mrf.mxu0
    %v1679 = vadd.f32 %v1666, %v1678
    %v1680 = vpop.f32.mrf.mxu0
    %1681 = vdwg.mxu0
    %1682 = vmatpush.bf16.msra.mxu0 %v1460
    %1683 = vmatpush.bf16.msra.mxu0 %v1456
    %1684 = vmatpush.bf16.msra.mxu0 %v1452
    %1685 = vmatpush.bf16.msra.mxu0 %v1448
    %1686 = vmatpush.bf16.msra.mxu0 %v1444
    %1687 = vmatpush.bf16.msra.mxu0 %v1440
    %1688 = vmatpush.bf16.msra.mxu0 %v1436
    %1689 = vmatpush.bf16.msra.mxu0 %v1432
    %1690 = vmatmul.bf16.gmra.mxu0 %v726
    %v1691 = vpop.f32.mrf.mxu0
    %v1692 = vadd.f32 %v1679, %v1691
    %v1693 = vpop.f32.mrf.mxu0
    %1694 = vdwg.mxu0
    %1695 = vmatpush.bf16.msra.mxu0 %v1365
    %1696 = vmatpush.bf16.msra.mxu0 %v1361
    %1697 = vmatpush.bf16.msra.mxu0 %v1357
    %1698 = vmatpush.bf16.msra.mxu0 %v1353
    %1699 = vmatpush.bf16.msra.mxu0 %v1349
    %1700 = vmatpush.bf16.msra.mxu0 %v1345
    %1701 = vmatpush.bf16.msra.mxu0 %v1341
    %1702 = vmatpush.bf16.msra.mxu0 %v1337
    %1703 = vmatmul.bf16.gmra.mxu0 %v723
    %v1704 = vpop.f32.mrf.mxu0
    %v1705 = vadd.f32 %v929, %v1704
    %v1706 = vpop.f32.mrf.mxu0
    %1707 = vdwg.mxu0
    %1708 = vmatpush.bf16.msra.mxu0 %v1397
    %1709 = vmatpush.bf16.msra.mxu0 %v1393
    %1710 = vmatpush.bf16.msra.mxu0 %v1389
    %1711 = vmatpush.bf16.msra.mxu0 %v1385
    %1712 = vmatpush.bf16.msra.mxu0 %v1381
    %1713 = vmatpush.bf16.msra.mxu0 %v1377
    %1714 = vmatpush.bf16.msra.mxu0 %v1373
    %1715 = vmatpush.bf16.msra.mxu0 %v1369
    %1716 = vmatmul.bf16.gmra.mxu0 %v724
    %v1717 = vpop.f32.mrf.mxu0
    %v1718 = vadd.f32 %v1705, %v1717
    %v1719 = vpop.f32.mrf.mxu0
    %1720 = vdwg.mxu0
    %1721 = vmatpush.bf16.msra.mxu0 %v1429
    %1722 = vmatpush.bf16.msra.mxu0 %v1425
    %1723 = vmatpush.bf16.msra.mxu0 %v1421
    %1724 = vmatpush.bf16.msra.mxu0 %v1417
    %1725 = vmatpush.bf16.msra.mxu0 %v1413
    %1726 = vmatpush.bf16.msra.mxu0 %v1409
    %1727 = vmatpush.bf16.msra.mxu0 %v1405
    %1728 = vmatpush.bf16.msra.mxu0 %v1401
    %1729 = vmatmul.bf16.gmra.mxu0 %v725
    %v1730 = vpop.f32.mrf.mxu0
    %v1731 = vadd.f32 %v1718, %v1730
    %v1732 = vpop.f32.mrf.mxu0
    %1733 = vdwg.mxu0
    %1734 = vmatpush.bf16.msra.mxu0 %v1461
    %1735 = vmatpush.bf16.msra.mxu0 %v1457
    %1736 = vmatpush.bf16.msra.mxu0 %v1453
    %1737 = vmatpush.bf16.msra.mxu0 %v1449
    %1738 = vmatpush.bf16.msra.mxu0 %v1445
    %1739 = vmatpush.bf16.msra.mxu0 %v1441
    %1740 = vmatpush.bf16.msra.mxu0 %v1437
    %1741 = vmatpush.bf16.msra.mxu0 %v1433
    %1742 = vmatmul.bf16.gmra.mxu0 %v726
    %v1743 = vpop.f32.mrf.mxu0
    %v1744 = vadd.f32 %v1731, %v1743
    %v1745 = vpop.f32.mrf.mxu0
    %1746 = vdwg.mxu0
    %1747 = vmatpush.bf16.msra.mxu0 %v1366
    %1748 = vmatpush.bf16.msra.mxu0 %v1362
    %1749 = vmatpush.bf16.msra.mxu0 %v1358
    %1750 = vmatpush.bf16.msra.mxu0 %v1354
    %1751 = vmatpush.bf16.msra.mxu0 %v1350
    %1752 = vmatpush.bf16.msra.mxu0 %v1346
    %1753 = vmatpush.bf16.msra.mxu0 %v1342
    %1754 = vmatpush.bf16.msra.mxu0 %v1338
    %1755 = vmatmul.bf16.gmra.mxu0 %v723
    %v1756 = vpop.f32.mrf.mxu0
    %v1757 = vadd.f32 %v949, %v1756
    %v1758 = vpop.f32.mrf.mxu0
    %1759 = vdwg.mxu0
    %1760 = vmatpush.bf16.msra.mxu0 %v1398
    %1761 = vmatpush.bf16.msra.mxu0 %v1394
    %1762 = vmatpush.bf16.msra.mxu0 %v1390
    %1763 = vmatpush.bf16.msra.mxu0 %v1386
    %1764 = vmatpush.bf16.msra.mxu0 %v1382
    %1765 = vmatpush.bf16.msra.mxu0 %v1378
    %1766 = vmatpush.bf16.msra.mxu0 %v1374
    %1767 = vmatpush.bf16.msra.mxu0 %v1370
    %1768 = vmatmul.bf16.gmra.mxu0 %v724
    %v1769 = vpop.f32.mrf.mxu0
    %v1770 = vadd.f32 %v1757, %v1769
    %v1771 = vpop.f32.mrf.mxu0
    %1772 = vdwg.mxu0
    %1773 = vmatpush.bf16.msra.mxu0 %v1430
    %1774 = vmatpush.bf16.msra.mxu0 %v1426
    %1775 = vmatpush.bf16.msra.mxu0 %v1422
    %1776 = vmatpush.bf16.msra.mxu0 %v1418
    %1777 = vmatpush.bf16.msra.mxu0 %v1414
    %1778 = vmatpush.bf16.msra.mxu0 %v1410
    %1779 = vmatpush.bf16.msra.mxu0 %v1406
    %1780 = vmatpush.bf16.msra.mxu0 %v1402
    %1781 = vmatmul.bf16.gmra.mxu0 %v725
    %v1782 = vpop.f32.mrf.mxu0
    %v1783 = vadd.f32 %v1770, %v1782
    %v1784 = vpop.f32.mrf.mxu0
    %1785 = vdwg.mxu0
    %1786 = vmatpush.bf16.msra.mxu0 %v1462
    %1787 = vmatpush.bf16.msra.mxu0 %v1458
    %1788 = vmatpush.bf16.msra.mxu0 %v1454
    %1789 = vmatpush.bf16.msra.mxu0 %v1450
    %1790 = vmatpush.bf16.msra.mxu0 %v1446
    %1791 = vmatpush.bf16.msra.mxu0 %v1442
    %1792 = vmatpush.bf16.msra.mxu0 %v1438
    %1793 = vmatpush.bf16.msra.mxu0 %v1434
    %1794 = vmatmul.bf16.gmra.mxu0 %v726
    %v1795 = vpop.f32.mrf.mxu0
    %v1796 = vadd.f32 %v1783, %v1795
    %v1797 = vpop.f32.mrf.mxu0
    %1798 = vdwg.mxu0
    %v1799 = vld [vmem:[%s5 + $0x4] sm:$0xf]
    %v1801 = vperm.slane %v1799, 0
    %v1802 = vperm.slane %v1799, 1
    %v1803 = vperm.slane %v1799, 2
    %v1804 = vperm.slane %v1799, 3
    %v1809 = vadd.f32 %v1640, %v1801
    %v1810 = vadd.f32 %v1692, %v1802
    %v1811 = vadd.f32 %v1744, %v1803
    %v1812 = vadd.f32 %v1796, %v1804
    %v1813 = vmul.f32 %v1809, 0.2
    %v1814 = vmul.f32 %v1810, 0.2
    %v1815 = vmul.f32 %v1811, 0.2
    %v1816 = vmul.f32 %v1812, 0.2
    %v1817 = vmax.f32 %v1809, %v1813
    %v1818 = vmax.f32 %v1810, %v1814
    %v1819 = vmax.f32 %v1811, %v1815
    %v1820 = vmax.f32 %v1812, %v1816
    %1821 = vmatpush.msra.mxu0 %v102
    %1822 = vmatpush.msra.mxu0 %v101
    %1823 = vmatpush.msra.mxu0 %v100
    %1824 = vmatpush.msra.mxu0 %v99
    %1825 = vmatpush.msra.mxu0 %v98
    %1826 = vmatpush.msra.mxu0 %v97
    %1827 = vmatpush.msra.mxu0 %v96
    %1828 = vmatpush.msra.mxu0 %v95
    %1829 = vmatpush.msra.mxu0 %v94
    %1830 = vmatpush.msra.mxu0 %v93
    %1831 = vmatpush.msra.mxu0 %v92
    %1832 = vmatpush.msra.mxu0 %v91
    %1833 = vmatpush.msra.mxu0 %v90
    %1834 = vmatpush.msra.mxu0 %v89
    %1835 = vmatpush.msra.mxu0 %v88
    %1836 = vmatpush.msra.mxu0 %v87
    %1837 = vmatmul.f32.gmra.mxu0 %v1817
    %v1838 = vpop.f32.mrf.mxu0
    %v1839 = vadd.f32 0.0, %v1838
    %1840 = vdwg.mxu0
    %1841 = vmatpush.msra.mxu0 %v118
    %1842 = vmatpush.msra.mxu0 %v117
    %1843 = vmatpush.msra.mxu0 %v116
    %1844 = vmatpush.msra.mxu0 %v115
    %1845 = vmatpush.msra.mxu0 %v114
    %1846 = vmatpush.msra.mxu0 %v113
    %1847 = vmatpush.msra.mxu0 %v112
    %1848 = vmatpush.msra.mxu0 %v111
    %1849 = vmatpush.msra.mxu0 %v110
    %1850 = vmatpush.msra.mxu0 %v109
    %1851 = vmatpush.msra.mxu0 %v108
    %1852 = vmatpush.msra.mxu0 %v107
    %1853 = vmatpush.msra.mxu0 %v106
    %1854 = vmatpush.msra.mxu0 %v105
    %1855 = vmatpush.msra.mxu0 %v104
    %1856 = vmatpush.msra.mxu0 %v103
    %1857 = vmatmul.f32.gmra.mxu0 %v1818
    %v1858 = vpop.f32.mrf.mxu0
    %v1859 = vadd.f32 %v1839, %v1858
    %1860 = vdwg.mxu0
    %1861 = vmatpush.msra.mxu0 %v134
    %1862 = vmatpush.msra.mxu0 %v133
    %1863 = vmatpush.msra.mxu0 %v132
    %1864 = vmatpush.msra.mxu0 %v131
    %1865 = vmatpush.msra.mxu0 %v130
    %1866 = vmatpush.msra.mxu0 %v129
    %1867 = vmatpush.msra.mxu0 %v128
    %1868 = vmatpush.msra.mxu0 %v127
    %1869 = vmatpush.msra.mxu0 %v126
    %1870 = vmatpush.msra.mxu0 %v125
    %1871 = vmatpush.msra.mxu0 %v124
    %1872 = vmatpush.msra.mxu0 %v123
    %1873 = vmatpush.msra.mxu0 %v122
    %1874 = vmatpush.msra.mxu0 %v121
    %1875 = vmatpush.msra.mxu0 %v120
    %1876 = vmatpush.msra.mxu0 %v119
    %1877 = vmatmul.f32.gmra.mxu0 %v1819
    %v1878 = vpop.f32.mrf.mxu0
    %v1879 = vadd.f32 %v1859, %v1878
    %1880 = vdwg.mxu0
    %1881 = vmatpush.msra.mxu0 %v150
    %1882 = vmatpush.msra.mxu0 %v149
    %1883 = vmatpush.msra.mxu0 %v148
    %1884 = vmatpush.msra.mxu0 %v147
    %1885 = vmatpush.msra.mxu0 %v146
    %1886 = vmatpush.msra.mxu0 %v145
    %1887 = vmatpush.msra.mxu0 %v144
    %1888 = vmatpush.msra.mxu0 %v143
    %1889 = vmatpush.msra.mxu0 %v142
    %1890 = vmatpush.msra.mxu0 %v141
    %1891 = vmatpush.msra.mxu0 %v140
    %1892 = vmatpush.msra.mxu0 %v139
    %1893 = vmatpush.msra.mxu0 %v138
    %1894 = vmatpush.msra.mxu0 %v137
    %1895 = vmatpush.msra.mxu0 %v136
    %1896 = vmatpush.msra.mxu0 %v135
    %1897 = vmatmul.f32.gmra.mxu0 %v1820
    %v1898 = vpop.f32.mrf.mxu0
    %v1899 = vadd.f32 %v1879, %v1898
    %1900 = vdwg.mxu0
    %v1902 = vsel %vm193, %v1899, 0
    %1904 = vmatpush.msra.mxu0 0.0
    %1905 = vmatpush.msra.mxu0 0.0
    %1906 = vmatpush.msra.mxu0 0.0
    %1907 = vmatpush.msra.mxu0 0.0
    %1908 = vmatpush.msra.mxu0 0.0
    %1909 = vmatpush.msra.mxu0 0.0
    %1910 = vmatpush.msra.mxu0 0.0
    %1911 = vmatpush.msra.mxu0 0.0
    %1912 = vmatpush.msra.mxu0 0.0
    %1913 = vmatpush.msra.mxu0 0.0
    %1914 = vmatpush.msra.mxu0 0.0
    %1915 = vmatpush.msra.mxu0 0.0
    %1916 = vmatpush.msra.mxu0 %v163
    %1917 = vmatpush.msra.mxu0 %v159
    %1918 = vmatpush.msra.mxu0 %v155
    %1919 = vmatpush.msra.mxu0 %v151
    %1920 = vmatmul.f32.gmra.mxu0 %v1902
    %v1921 = vpop.f32.mrf.mxu0
    %v1922 = vadd.f32 0.0, %v1921
    %1923 = vdwg.mxu0
    %1924 = vmatpush.msra.mxu0 0.0
    %1925 = vmatpush.msra.mxu0 0.0
    %1926 = vmatpush.msra.mxu0 0.0
    %1927 = vmatpush.msra.mxu0 0.0
    %1928 = vmatpush.msra.mxu0 0.0
    %1929 = vmatpush.msra.mxu0 0.0
    %1930 = vmatpush.msra.mxu0 0.0
    %1931 = vmatpush.msra.mxu0 0.0
    %1932 = vmatpush.msra.mxu0 0.0
    %1933 = vmatpush.msra.mxu0 0.0
    %1934 = vmatpush.msra.mxu0 0.0
    %1935 = vmatpush.msra.mxu0 0.0
    %1936 = vmatpush.msra.mxu0 %v164
    %1937 = vmatpush.msra.mxu0 %v160
    %1938 = vmatpush.msra.mxu0 %v156
    %1939 = vmatpush.msra.mxu0 %v152
    %1940 = vmatmul.f32.gmra.mxu0 %v1902
    %v1941 = vpop.f32.mrf.mxu0
    %v1942 = vadd.f32 0.0, %v1941
    %1943 = vdwg.mxu0
    %1944 = vmatpush.msra.mxu0 0.0
    %1945 = vmatpush.msra.mxu0 0.0
    %1946 = vmatpush.msra.mxu0 0.0
    %1947 = vmatpush.msra.mxu0 0.0
    %1948 = vmatpush.msra.mxu0 0.0
    %1949 = vmatpush.msra.mxu0 0.0
    %1950 = vmatpush.msra.mxu0 0.0
    %1951 = vmatpush.msra.mxu0 0.0
    %1952 = vmatpush.msra.mxu0 0.0
    %1953 = vmatpush.msra.mxu0 0.0
    %1954 = vmatpush.msra.mxu0 0.0
    %1955 = vmatpush.msra.mxu0 0.0
    %1956 = vmatpush.msra.mxu0 %v165
    %1957 = vmatpush.msra.mxu0 %v161
    %1958 = vmatpush.msra.mxu0 %v157
    %1959 = vmatpush.msra.mxu0 %v153
    %1960 = vmatmul.f32.gmra.mxu0 %v1902
    %v1961 = vpop.f32.mrf.mxu0
    %v1962 = vadd.f32 0.0, %v1961
    %1963 = vdwg.mxu0
    %1964 = vmatpush.msra.mxu0 0.0
    %1965 = vmatpush.msra.mxu0 0.0
    %1966 = vmatpush.msra.mxu0 0.0
    %1967 = vmatpush.msra.mxu0 0.0
    %1968 = vmatpush.msra.mxu0 0.0
    %1969 = vmatpush.msra.mxu0 0.0
    %1970 = vmatpush.msra.mxu0 0.0
    %1971 = vmatpush.msra.mxu0 0.0
    %1972 = vmatpush.msra.mxu0 0.0
    %1973 = vmatpush.msra.mxu0 0.0
    %1974 = vmatpush.msra.mxu0 0.0
    %1975 = vmatpush.msra.mxu0 0.0
    %1976 = vmatpush.msra.mxu0 %v166
    %1977 = vmatpush.msra.mxu0 %v162
    %1978 = vmatpush.msra.mxu0 %v158
    %1979 = vmatpush.msra.mxu0 %v154
    %1980 = vmatmul.f32.gmra.mxu0 %v1902
    %v1981 = vpop.f32.mrf.mxu0
    %v1982 = vadd.f32 0.0, %v1981
    %1983 = vdwg.mxu0
    %v1984 = vsub.f32 %v1817, %v1922
    %v1985 = vsub.f32 %v1818, %v1942
    %v1986 = vsub.f32 %v1819, %v1962
    %v1987 = vsub.f32 %v1820, %v1982
    %v1988 = vmul.f32 %v1984, %v1984
    %v1989 = vmul.f32 %v1985, %v1985
    %v1990 = vmul.f32 %v1986, %v1986
    %v1991 = vmul.f32 %v1987, %v1987
    %1992 = vmatpush.msra.mxu0 %v102
    %1993 = vmatpush.msra.mxu0 %v101
    %1994 = vmatpush.msra.mxu0 %v100
    %1995 = vmatpush.msra.mxu0 %v99
    %1996 = vmatpush.msra.mxu0 %v98
    %1997 = vmatpush.msra.mxu0 %v97
    %1998 = vmatpush.msra.mxu0 %v96
    %1999 = vmatpush.msra.mxu0 %v95
    %2000 = vmatpush.msra.mxu0 %v94
    %2001 = vmatpush.msra.mxu0 %v93
    %2002 = vmatpush.msra.mxu0 %v92
    %2003 = vmatpush.msra.mxu0 %v91
    %2004 = vmatpush.msra.mxu0 %v90
    %2005 = vmatpush.msra.mxu0 %v89
    %2006 = vmatpush.msra.mxu0 %v88
    %2007 = vmatpush.msra.mxu0 %v87
    %2008 = vmatmul.f32.gmra.mxu0 %v1988
    %v2009 = vpop.f32.mrf.mxu0
    %v2010 = vadd.f32 1e-05, %v2009
    %2011 = vdwg.mxu0
    %2012 = vmatpush.msra.mxu0 %v118
    %2013 = vmatpush.msra.mxu0 %v117
    %2014 = vmatpush.msra.mxu0 %v116
    %2015 = vmatpush.msra.mxu0 %v115
    %2016 = vmatpush.msra.mxu0 %v114
    %2017 = vmatpush.msra.mxu0 %v113
    %2018 = vmatpush.msra.mxu0 %v112
    %2019 = vmatpush.msra.mxu0 %v111
    %2020 = vmatpush.msra.mxu0 %v110
    %2021 = vmatpush.msra.mxu0 %v109
    %2022 = vmatpush.msra.mxu0 %v108
    %2023 = vmatpush.msra.mxu0 %v107
    %2024 = vmatpush.msra.mxu0 %v106
    %2025 = vmatpush.msra.mxu0 %v105
    %2026 = vmatpush.msra.mxu0 %v104
    %2027 = vmatpush.msra.mxu0 %v103
    %2028 = vmatmul.f32.gmra.mxu0 %v1989
    %v2029 = vpop.f32.mrf.mxu0
    %v2030 = vadd.f32 %v2010, %v2029
    %2031 = vdwg.mxu0
    %2032 = vmatpush.msra.mxu0 %v134
    %2033 = vmatpush.msra.mxu0 %v133
    %2034 = vmatpush.msra.mxu0 %v132
    %2035 = vmatpush.msra.mxu0 %v131
    %2036 = vmatpush.msra.mxu0 %v130
    %2037 = vmatpush.msra.mxu0 %v129
    %2038 = vmatpush.msra.mxu0 %v128
    %2039 = vmatpush.msra.mxu0 %v127
    %2040 = vmatpush.msra.mxu0 %v126
    %2041 = vmatpush.msra.mxu0 %v125
    %2042 = vmatpush.msra.mxu0 %v124
    %2043 = vmatpush.msra.mxu0 %v123
    %2044 = vmatpush.msra.mxu0 %v122
    %2045 = vmatpush.msra.mxu0 %v121
    %2046 = vmatpush.msra.mxu0 %v120
    %2047 = vmatpush.msra.mxu0 %v119
    %2048 = vmatmul.f32.gmra.mxu0 %v1990
    %v2049 = vpop.f32.mrf.mxu0
    %v2050 = vadd.f32 %v2030, %v2049
    %2051 = vdwg.mxu0
    %2052 = vmatpush.msra.mxu0 %v150
    %2053 = vmatpush.msra.mxu0 %v149
    %2054 = vmatpush.msra.mxu0 %v148
    %2055 = vmatpush.msra.mxu0 %v147
    %2056 = vmatpush.msra.mxu0 %v146
    %2057 = vmatpush.msra.mxu0 %v145
    %2058 = vmatpush.msra.mxu0 %v144
    %2059 = vmatpush.msra.mxu0 %v143
    %2060 = vmatpush.msra.mxu0 %v142
    %2061 = vmatpush.msra.mxu0 %v141
    %2062 = vmatpush.msra.mxu0 %v140
    %2063 = vmatpush.msra.mxu0 %v139
    %2064 = vmatpush.msra.mxu0 %v138
    %2065 = vmatpush.msra.mxu0 %v137
    %2066 = vmatpush.msra.mxu0 %v136
    %2067 = vmatpush.msra.mxu0 %v135
    %2068 = vmatmul.f32.gmra.mxu0 %v1991
    %v2069 = vpop.f32.mrf.mxu0
    %v2070 = vadd.f32 %v2050, %v2069
    %2071 = vdwg.mxu0
    %v2072 = vrsqrt.pop %v2070
    %v2073 = vmul.f32 %v2072, %v2070
    %v2074 = vmul.f32 %v2073, %v2072
    %v2075 = vmul.f32 0.5, %v2074
    %v2076 = vsub.f32 1.5, %v2075
    %v2077 = vmul.f32 %v2072, %v2076
    %vm2078 = vweird.f32 %v2070
    %vm2079 = vweird.f32 %v2072
    %vm2080 = vmor %vm2078, %vm2079
    %v2081 = vsel %vm2080, %v2072, %v2077
    %2082 = vrot.lane.b32.xlu0 %v84, 64
    %v2083 = vpop.permute.xlu0 %2082
    %v2085 = vmul.f32 %v2081, %v2083
    %v2087 = vsel %vm193, %v2085, 0
    %2089 = vmatpush.msra.mxu0 0.0
    %2090 = vmatpush.msra.mxu0 0.0
    %2091 = vmatpush.msra.mxu0 0.0
    %2092 = vmatpush.msra.mxu0 0.0
    %2093 = vmatpush.msra.mxu0 0.0
    %2094 = vmatpush.msra.mxu0 0.0
    %2095 = vmatpush.msra.mxu0 0.0
    %2096 = vmatpush.msra.mxu0 0.0
    %2097 = vmatpush.msra.mxu0 0.0
    %2098 = vmatpush.msra.mxu0 0.0
    %2099 = vmatpush.msra.mxu0 0.0
    %2100 = vmatpush.msra.mxu0 0.0
    %2101 = vmatpush.msra.mxu0 %v163
    %2102 = vmatpush.msra.mxu0 %v159
    %2103 = vmatpush.msra.mxu0 %v155
    %2104 = vmatpush.msra.mxu0 %v151
    %2105 = vmatmul.f32.gmra.mxu0 %v2087
    %v2106 = vpop.f32.mrf.mxu0
    %v2107 = vadd.f32 0.0, %v2106
    %2108 = vdwg.mxu0
    %2109 = vmatpush.msra.mxu0 0.0
    %2110 = vmatpush.msra.mxu0 0.0
    %2111 = vmatpush.msra.mxu0 0.0
    %2112 = vmatpush.msra.mxu0 0.0
    %2113 = vmatpush.msra.mxu0 0.0
    %2114 = vmatpush.msra.mxu0 0.0
    %2115 = vmatpush.msra.mxu0 0.0
    %2116 = vmatpush.msra.mxu0 0.0
    %2117 = vmatpush.msra.mxu0 0.0
    %2118 = vmatpush.msra.mxu0 0.0
    %2119 = vmatpush.msra.mxu0 0.0
    %2120 = vmatpush.msra.mxu0 0.0
    %2121 = vmatpush.msra.mxu0 %v164
    %2122 = vmatpush.msra.mxu0 %v160
    %2123 = vmatpush.msra.mxu0 %v156
    %2124 = vmatpush.msra.mxu0 %v152
    %2125 = vmatmul.f32.gmra.mxu0 %v2087
    %v2126 = vpop.f32.mrf.mxu0
    %v2127 = vadd.f32 0.0, %v2126
    %2128 = vdwg.mxu0
    %2129 = vmatpush.msra.mxu0 0.0
    %2130 = vmatpush.msra.mxu0 0.0
    %2131 = vmatpush.msra.mxu0 0.0
    %2132 = vmatpush.msra.mxu0 0.0
    %2133 = vmatpush.msra.mxu0 0.0
    %2134 = vmatpush.msra.mxu0 0.0
    %2135 = vmatpush.msra.mxu0 0.0
    %2136 = vmatpush.msra.mxu0 0.0
    %2137 = vmatpush.msra.mxu0 0.0
    %2138 = vmatpush.msra.mxu0 0.0
    %2139 = vmatpush.msra.mxu0 0.0
    %2140 = vmatpush.msra.mxu0 0.0
    %2141 = vmatpush.msra.mxu0 %v165
    %2142 = vmatpush.msra.mxu0 %v161
    %2143 = vmatpush.msra.mxu0 %v157
    %2144 = vmatpush.msra.mxu0 %v153
    %2145 = vmatmul.f32.gmra.mxu0 %v2087
    %v2146 = vpop.f32.mrf.mxu0
    %v2147 = vadd.f32 0.0, %v2146
    %2148 = vdwg.mxu0
    %2149 = vmatpush.msra.mxu0 0.0
    %2150 = vmatpush.msra.mxu0 0.0
    %2151 = vmatpush.msra.mxu0 0.0
    %2152 = vmatpush.msra.mxu0 0.0
    %2153 = vmatpush.msra.mxu0 0.0
    %2154 = vmatpush.msra.mxu0 0.0
    %2155 = vmatpush.msra.mxu0 0.0
    %2156 = vmatpush.msra.mxu0 0.0
    %2157 = vmatpush.msra.mxu0 0.0
    %2158 = vmatpush.msra.mxu0 0.0
    %2159 = vmatpush.msra.mxu0 0.0
    %2160 = vmatpush.msra.mxu0 0.0
    %2161 = vmatpush.msra.mxu0 %v166
    %2162 = vmatpush.msra.mxu0 %v162
    %2163 = vmatpush.msra.mxu0 %v158
    %2164 = vmatpush.msra.mxu0 %v154
    %2165 = vmatmul.f32.gmra.mxu0 %v2087
    %v2166 = vpop.f32.mrf.mxu0
    %v2167 = vadd.f32 0.0, %v2166
    %2168 = vdwg.mxu0
    %v2169 = vmul.f32 %v1984, %v2107
    %v2170 = vmul.f32 %v1985, %v2127
    %v2171 = vmul.f32 %v1986, %v2147
    %v2172 = vmul.f32 %v1987, %v2167
    %2173 = vrot.lane.b32.xlu0 %v84, 32
    %v2174 = vpop.permute.xlu0 %2173
    %v2175 = vsel %vm193, %v2174, 0
    %2177 = vmatpush.msra.mxu0 0.0
    %2178 = vmatpush.msra.mxu0 0.0
    %2179 = vmatpush.msra.mxu0 0.0
    %2180 = vmatpush.msra.mxu0 0.0
    %2181 = vmatpush.msra.mxu0 0.0
    %2182 = vmatpush.msra.mxu0 0.0
    %2183 = vmatpush.msra.mxu0 0.0
    %2184 = vmatpush.msra.mxu0 0.0
    %2185 = vmatpush.msra.mxu0 0.0
    %2186 = vmatpush.msra.mxu0 0.0
    %2187 = vmatpush.msra.mxu0 0.0
    %2188 = vmatpush.msra.mxu0 0.0
    %2189 = vmatpush.msra.mxu0 %v163
    %2190 = vmatpush.msra.mxu0 %v159
    %2191 = vmatpush.msra.mxu0 %v155
    %2192 = vmatpush.msra.mxu0 %v151
    %2193 = vmatmul.f32.gmra.mxu0 %v2175
    %v2194 = vpop.f32.mrf.mxu0
    %v2195 = vadd.f32 0.0, %v2194
    %2196 = vdwg.mxu0
    %2197 = vmatpush.msra.mxu0 0.0
    %2198 = vmatpush.msra.mxu0 0.0
    %2199 = vmatpush.msra.mxu0 0.0
    %2200 = vmatpush.msra.mxu0 0.0
    %2201 = vmatpush.msra.mxu0 0.0
    %2202 = vmatpush.msra.mxu0 0.0
    %2203 = vmatpush.msra.mxu0 0.0
    %2204 = vmatpush.msra.mxu0 0.0
    %2205 = vmatpush.msra.mxu0 0.0
    %2206 = vmatpush.msra.mxu0 0.0
    %2207 = vmatpush.msra.mxu0 0.0
    %2208 = vmatpush.msra.mxu0 0.0
    %2209 = vmatpush.msra.mxu0 %v164
    %2210 = vmatpush.msra.mxu0 %v160
    %2211 = vmatpush.msra.mxu0 %v156
    %2212 = vmatpush.msra.mxu0 %v152
    %2213 = vmatmul.f32.gmra.mxu0 %v2175
    %v2214 = vpop.f32.mrf.mxu0
    %v2215 = vadd.f32 0.0, %v2214
    %2216 = vdwg.mxu0
    %2217 = vmatpush.msra.mxu0 0.0
    %2218 = vmatpush.msra.mxu0 0.0
    %2219 = vmatpush.msra.mxu0 0.0
    %2220 = vmatpush.msra.mxu0 0.0
    %2221 = vmatpush.msra.mxu0 0.0
    %2222 = vmatpush.msra.mxu0 0.0
    %2223 = vmatpush.msra.mxu0 0.0
    %2224 = vmatpush.msra.mxu0 0.0
    %2225 = vmatpush.msra.mxu0 0.0
    %2226 = vmatpush.msra.mxu0 0.0
    %2227 = vmatpush.msra.mxu0 0.0
    %2228 = vmatpush.msra.mxu0 0.0
    %2229 = vmatpush.msra.mxu0 %v165
    %2230 = vmatpush.msra.mxu0 %v161
    %2231 = vmatpush.msra.mxu0 %v157
    %2232 = vmatpush.msra.mxu0 %v153
    %2233 = vmatmul.f32.gmra.mxu0 %v2175
    %v2234 = vpop.f32.mrf.mxu0
    %v2235 = vadd.f32 0.0, %v2234
    %2236 = vdwg.mxu0
    %2237 = vmatpush.msra.mxu0 0.0
    %2238 = vmatpush.msra.mxu0 0.0
    %2239 = vmatpush.msra.mxu0 0.0
    %2240 = vmatpush.msra.mxu0 0.0
    %2241 = vmatpush.msra.mxu0 0.0
    %2242 = vmatpush.msra.mxu0 0.0
    %2243 = vmatpush.msra.mxu0 0.0
    %2244 = vmatpush.msra.mxu0 0.0
    %2245 = vmatpush.msra.mxu0 0.0
    %2246 = vmatpush.msra.mxu0 0.0
    %2247 = vmatpush.msra.mxu0 0.0
    %2248 = vmatpush.msra.mxu0 0.0
    %2249 = vmatpush.msra.mxu0 %v166
    %2250 = vmatpush.msra.mxu0 %v162
    %2251 = vmatpush.msra.mxu0 %v158
    %2252 = vmatpush.msra.mxu0 %v154
    %2253 = vmatmul.f32.gmra.mxu0 %v2175
    %v2254 = vpop.f32.mrf.mxu0
    %v2255 = vadd.f32 0.0, %v2254
    %2256 = vdwg.mxu0
    %v2257 = vadd.f32 %v2169, %v2195
    %v2258 = vadd.f32 %v2170, %v2215
    %v2259 = vadd.f32 %v2171, %v2235
    %v2260 = vadd.f32 %v2172, %v2255
    %2261 = vst [vmem:[#allocation5] sm:$0xff] %v2257
    %2262 = vst [vmem:[#allocation5 + $0x8] sm:$0xff] %v2258
    %2263 = vst [vmem:[#allocation5 + $0x10] sm:$0xff] %v2259
    %2264 = vst [vmem:[#allocation5 + $0x18] sm:$0xff] %v2260
    // Predicated region
    $region42: #{tpu_custom_call.1} parent=1 // pred_check
      _
    $region43: #{tpu_custom_call.1} parent=1 // pred_check_branch
      %2266 = sbr.rel (0) target = $region45
    $region44: #{tpu_custom_call.1} parent=1 // pred_region
      %2268 = vsyncadd [#allocation4], 0
      %s2270 = sshll.u32 [#allocation5], 4
      %s2271 = int_to_ptr.vmem [resolvable:$true] %s2270
      %s2272 = sshll.u32 %s9, 4
      %s2273 = int_to_ptr.hbm [resolvable:$true] %s2272
      %2275 = dma.vmem_to_hbm [thread:$0]  %s2271, 512, %s2273, [#allocation4]
    $region45: #{tpu_custom_call.1} parent=1 // pred_fallthru
      _
    // Predicated region
    $region46: #{tpu_custom_call.1} parent=1 // pred_check
      _
    $region47: #{tpu_custom_call.1} parent=1 // pred_check_branch
      %2277 = sbr.rel (0) target = $region49
    $region48: #{tpu_custom_call.1} parent=1 // pred_region
      %2279 = dma.done [#allocation4], 512
    $region49: #{tpu_custom_call.1} parent=1 // pred_fallthru
      _
    %2280 = vsyncpa [#allocation3], 1
    %2281 = vsyncpa [#allocation4], 1

</llo_original>
